<compile_context>
chip_gen: v6e
topology: v6e:2x2x1
jax: 0.10.0
libtpu: 0.0.40
codegen_flags: <defaults>
</compile_context>

<pallas_src>
import functools

import jax
import jax.numpy as jnp
from jax.experimental import pallas as pl
from jax.experimental.pallas import tpu as pltpu

BN_EPS = 1e-5
VMEM_LIMIT_BYTES = 32 * 1024 * 1024   # explicit scoped-VMEM budget; safe on v5e/v6e/v7x
DEFAULT_TILE_B = 512                  # multiple of 256 keeps the 256-wide MXU full


def _round_up(n: int, m: int) -> int:
    return ((n + m - 1) // m) * m


def _pick_tile_b(batch: int) -> int:
    b8 = _round_up(batch, 8)
    return b8 if b8 <= DEFAULT_TILE_B else DEFAULT_TILE_B


def _valid_row_mask(n_valid, tile_b):
    """(tile_b, 1) f32 mask: 1.0 for rows < real batch size, else 0.0."""
    rows = pl.program_id(0) * tile_b + jax.lax.broadcasted_iota(jnp.int32, (tile_b, 1), 0)
    return (rows < n_valid).astype(jnp.float32)


# ---------------------------------------------------------------------------
# Kernel 1: BatchNorm statistics of the (padded) input, accumulated over batch tiles.
# ---------------------------------------------------------------------------
def bn_stats_kernel(n_ref, x_ref, mean_ref, rstd_ref):
    i = pl.program_id(0)

    @pl.when(i == 0)
    def _():
        mean_ref[...] = jnp.zeros_like(mean_ref)     # used as running sum
        rstd_ref[...] = jnp.zeros_like(rstd_ref)     # used as running sum of squares

    tile_b = x_ref.shape[0]
    n_valid = n_ref[0]
    mask = _valid_row_mask(n_valid, tile_b)
    xm = x_ref[...] * mask
    mean_ref[...] += jnp.sum(xm, axis=0, keepdims=True)
    rstd_ref[...] += jnp.sum(xm * xm, axis=0, keepdims=True)

    @pl.when(i == pl.num_programs(0) - 1)
    def _():
        inv_n = 1.0 / n_valid.astype(jnp.float32)
        m = mean_ref[...] * inv_n
        v = jnp.maximum(rstd_ref[...] * inv_n - m * m, 0.0)   # E[x^2] - mean^2 (biased, train-mode BN)
        mean_ref[...] = m
        rstd_ref[...] = jax.lax.rsqrt(v + BN_EPS)


# ---------------------------------------------------------------------------
# Kernel 2: one FeedForward layer (BN -> fused (w1||w2) matmul -> SiLU gate) for a batch
# tile, plus accumulation of the NEXT layer's BN statistics across tiles.
# ---------------------------------------------------------------------------
def ff_layer_kernel(n_ref, x_ref, mean_ref, rstd_ref, gamma_ref, beta_ref,
                    w12_ref, b12_ref, out_ref, nmean_ref, nrstd_ref):
    i = pl.program_id(0)

    @pl.when(i == 0)
    def _():
        nmean_ref[...] = jnp.zeros_like(nmean_ref)   # running sum
        nrstd_ref[...] = jnp.zeros_like(nrstd_ref)   # running sum of squares

    # BatchNorm1d (training-mode stats, precomputed) -- f32 element-wise math.
    xn = (x_ref[...] - mean_ref[...]) * rstd_ref[...] * gamma_ref[...] + beta_ref[...]

    # Single fused MXU matmul for both branches: xn @ [w1 || w2] + [b1 || b2].
    h = jnp.dot(xn.astype(jnp.bfloat16), w12_ref[...],
                preferred_element_type=jnp.float32) + b12_ref[...]
    hd = h.shape[1] // 2
    h1 = h[:, :hd]
    h2 = h[:, hd:]
    out = (h1 * jax.nn.sigmoid(h1)) * h2             # SiLU(h1) * h2
    out_ref[...] = out

    # Accumulate next layer's BN statistics (real rows only).
    tile_b = x_ref.shape[0]
    n_valid = n_ref[0]
    om = out * _valid_row_mask(n_valid, tile_b)
    nmean_ref[...] += jnp.sum(om, axis=0, keepdims=True)
    nrstd_ref[...] += jnp.sum(om * om, axis=0, keepdims=True)

    @pl.when(i == pl.num_programs(0) - 1)
    def _():
        inv_n = 1.0 / n_valid.astype(jnp.float32)
        m = nmean_ref[...] * inv_n
        v = jnp.maximum(nrstd_ref[...] * inv_n - m * m, 0.0)
        nmean_ref[...] = m
        nrstd_ref[...] = jax.lax.rsqrt(v + BN_EPS)


# ---------------------------------------------------------------------------
# Kernel 3: last FeedForward layer + classifier head.  No cross-tile coupling ->
# batch axis is "parallel" (megacore on v7x).
# ---------------------------------------------------------------------------
def final_layer_kernel(x_ref, mean_ref, rstd_ref, gamma_ref, beta_ref,
                       w12_ref, b12_ref, clf_w_ref, clf_b_ref, out_ref):
    xn = (x_ref[...] - mean_ref[...]) * rstd_ref[...] * gamma_ref[...] + beta_ref[...]
    h = jnp.dot(xn.astype(jnp.bfloat16), w12_ref[...],
                preferred_element_type=jnp.float32) + b12_ref[...]
    hd = h.shape[1] // 2
    h1 = h[:, :hd]
    h2 = h[:, hd:]
    act = (h1 * jax.nn.sigmoid(h1)) * h2
    logits = jnp.dot(act.astype(jnp.bfloat16), clf_w_ref[...],
                     preferred_element_type=jnp.float32) + clf_b_ref[...]
    out_ref[...] = logits.astype(out_ref.dtype)


# ---------------------------------------------------------------------------
# pallas_call wrappers
# ---------------------------------------------------------------------------
def bn_stats_pallas(n_valid, x_pad, tile_b):
    b_pad, d = x_pad.shape
    row = lambda i: (i, 0)
    const = lambda i: (0, 0)
    return pl.pallas_call(
        bn_stats_kernel,
        grid=(b_pad // tile_b,),
        in_specs=[
            pl.BlockSpec(memory_space=pltpu.MemorySpace.SMEM),
            pl.BlockSpec((tile_b, d), row),
        ],
        out_specs=[pl.BlockSpec((1, d), const), pl.BlockSpec((1, d), const)],
        out_shape=[jax.ShapeDtypeStruct((1, d), jnp.float32)] * 2,
        compiler_params=pltpu.CompilerParams(
            dimension_semantics=("arbitrary",),
            vmem_limit_bytes=VMEM_LIMIT_BYTES),
    )(n_valid, x_pad)


def ff_layer_pallas(n_valid, x_pad, mean, rstd, lp, tile_b):
    b_pad, d_in = x_pad.shape
    two_h = lp["w12"].shape[1]
    h = two_h // 2
    row = lambda i: (i, 0)
    const = lambda i: (0, 0)
    return pl.pallas_call(
        ff_layer_kernel,
        grid=(b_pad // tile_b,),
        in_specs=[
            pl.BlockSpec(memory_space=pltpu.MemorySpace.SMEM),
            pl.BlockSpec((tile_b, d_in), row),
            pl.BlockSpec((1, d_in), const),
            pl.BlockSpec((1, d_in), const),
            pl.BlockSpec((1, d_in), const),
            pl.BlockSpec((1, d_in), const),
            pl.BlockSpec((d_in, two_h), const),   # bf16 weights, resident across tiles
            pl.BlockSpec((1, two_h), const),
        ],
        out_specs=[
            pl.BlockSpec((tile_b, h), row),
            pl.BlockSpec((1, h), const),
            pl.BlockSpec((1, h), const),
        ],
        out_shape=[
            jax.ShapeDtypeStruct((b_pad, h), jnp.float32),
            jax.ShapeDtypeStruct((1, h), jnp.float32),
            jax.ShapeDtypeStruct((1, h), jnp.float32),
        ],
        compiler_params=pltpu.CompilerParams(
            dimension_semantics=("arbitrary",),
            vmem_limit_bytes=VMEM_LIMIT_BYTES),
    )(n_valid, x_pad, mean, rstd, lp["gamma"], lp["beta"], lp["w12"], lp["b12"])


def final_layer_pallas(x_pad, mean, rstd, lp, clf_w, clf_b, tile_b):
    b_pad, d_in = x_pad.shape
    two_h = lp["w12"].shape[1]
    h = two_h // 2
    l_pad = clf_w.shape[1]
    row = lambda i: (i, 0)
    const = lambda i: (0, 0)
    return pl.pallas_call(
        final_layer_kernel,
        grid=(b_pad // tile_b,),
        in_specs=[
            pl.BlockSpec((tile_b, d_in), row),
            pl.BlockSpec((1, d_in), const),
            pl.BlockSpec((1, d_in), const),
            pl.BlockSpec((1, d_in), const),
            pl.BlockSpec((1, d_in), const),
            pl.BlockSpec((d_in, two_h), const),
            pl.BlockSpec((1, two_h), const),
            pl.BlockSpec((h, l_pad), const),
            pl.BlockSpec((1, l_pad), const),
        ],
        out_specs=pl.BlockSpec((tile_b, l_pad), row),
        out_shape=jax.ShapeDtypeStruct((b_pad, l_pad), jnp.float32),
        compiler_params=pltpu.CompilerParams(
            dimension_semantics=("parallel",),
            vmem_limit_bytes=VMEM_LIMIT_BYTES),
    )(x_pad, mean, rstd, lp["gamma"], lp["beta"], lp["w12"], lp["b12"], clf_w, clf_b)


# ---------------------------------------------------------------------------
# Parameter init (logical / unpadded, PyTorch-equivalent layout) + padding prep
# ---------------------------------------------------------------------------
def init_params(key, config):
    num_features = config["num_features"]
    cat_dims = config["cat_dim"]
    hidden_dim_list = config["hidden_dim_list"]
    num_labels = config["num_labels"]

    params = {}
    emb_tables = []
    for cd in cat_dims:
        key, k = jax.random.split(key)
        emb_tables.append(jax.random.normal(k, (cd, 1), jnp.float32))
    params["emb_tables"] = emb_tables

    input_dim_list = [num_features] + list(hidden_dim_list[:-1])
    ffs = []
    for d_in, d_h in zip(input_dim_list, hidden_dim_list):
        key, k1, k2, k3, k4 = jax.random.split(key, 5)
        scale = 1.0 / jnp.sqrt(jnp.float32(d_in))
        ffs.append({
            "gamma": jnp.ones((1, d_in), jnp.float32),
            "beta": jnp.zeros((1, d_in), jnp.float32),
            "w1": jax.random.uniform(k1, (d_in, d_h), jnp.float32, -scale, scale),
            "b1": jax.random.uniform(k2, (1, d_h), jnp.float32, -scale, scale),
            "w2": jax.random.uniform(k3, (d_in, d_h), jnp.float32, -scale, scale),
            "b2": jax.random.uniform(k4, (1, d_h), jnp.float32, -scale, scale),
        })
    params["ffs"] = ffs

    d_last = hidden_dim_list[-1]
    key, k1, k2 = jax.random.split(key, 3)
    scale = 1.0 / jnp.sqrt(jnp.float32(d_last))
    params["clf_w"] = jax.random.uniform(k1, (d_last, num_labels), jnp.float32, -scale, scale)
    params["clf_b"] = jax.random.uniform(k2, (1, num_labels), jnp.float32, -scale, scale)
    return params


def prepare_padded_params(params, config):
    """Lane-pad to multiples of 128, concat w1||w2 / b1||b2, store weights in bf16."""
    num_features = config["num_features"]
    hidden_dim_list = config["hidden_dim_list"]
    num_labels = config["num_labels"]

    input_dim_list = [num_features] + list(hidden_dim_list[:-1])
    layer_params = []
    for ff, d_in, d_h in zip(params["ffs"], input_dim_list, hidden_dim_list):
        d_in_pad = _round_up(d_in, 128)
        d_h_pad = _round_up(d_h, 128)
        gamma = jnp.pad(ff["gamma"], ((0, 0), (0, d_in_pad - d_in)), constant_values=1.0)
        beta = jnp.pad(ff["beta"], ((0, 0), (0, d_in_pad - d_in)))
        w1 = jnp.pad(ff["w1"], ((0, d_in_pad - d_in), (0, d_h_pad - d_h)))
        w2 = jnp.pad(ff["w2"], ((0, d_in_pad - d_in), (0, d_h_pad - d_h)))
        b1 = jnp.pad(ff["b1"], ((0, 0), (0, d_h_pad - d_h)))
        b2 = jnp.pad(ff["b2"], ((0, 0), (0, d_h_pad - d_h)))
        layer_params.append({
            "gamma": gamma,
            "beta": beta,
            "w12": jnp.concatenate([w1, w2], axis=1).astype(jnp.bfloat16),  # (d_in_pad, 2*d_h_pad)
            "b12": jnp.concatenate([b1, b2], axis=1),                        # (1, 2*d_h_pad) f32
        })

    d_last = hidden_dim_list[-1]
    d_last_pad = _round_up(d_last, 128)
    l_pad = _round_up(num_labels, 128)
    clf_w = jnp.pad(params["clf_w"], ((0, d_last_pad - d_last), (0, l_pad - num_labels)))
    clf_b = jnp.pad(params["clf_b"], ((0, 0), (0, l_pad - num_labels)))
    return layer_params, clf_w.astype(jnp.bfloat16), clf_b


# ---------------------------------------------------------------------------
# Model forward
# ---------------------------------------------------------------------------
def embedding_generator(tables, categorical):
    # categorical: (B, num_cat) int32.  Each table is (cat_dim_i, 1); gather the single-dim
    # embedding per column and concat -> (B, num_cat).  Kept in JAX (tiny gathers).
    cols = [tables[i][categorical[:, i]] for i in range(len(tables))]
    return jnp.concatenate(cols, axis=1).astype(jnp.float32)


def tabular_model_forward(params, numerical, categorical, *, config, tile_b=None):
    num_cat = len(config["cat_features_idxs"])
    num_features = config["num_features"]
    num_labels = config["num_labels"]

    parts = []
    if num_features > num_cat:
        parts.append(numerical.astype(jnp.float32))
    if num_cat > 0:
        parts.append(embedding_generator(params["emb_tables"], categorical))
    x = jnp.concatenate(parts, axis=1)                       # (B, num_features)

    batch = x.shape[0]
    if tile_b is None:
        tile_b = _pick_tile_b(batch)
    assert tile_b % 8 == 0
    b_pad = _round_up(batch, tile_b)
    d0_pad = _round_up(num_features, 128)
    x_pad = jnp.pad(x, ((0, b_pad - batch), (0, d0_pad - num_features)))
    n_valid = jnp.array([batch], dtype=jnp.int32)            # SMEM scalar (no recompile per batch)

    layer_params, clf_w_pad, clf_b_pad = prepare_padded_params(params, config)

    # Training-mode BatchNorm (matches nn.BatchNorm1d in train()); stats over real rows only.
    mean, rstd = bn_stats_pallas(n_valid, x_pad, tile_b)
    for lp in layer_params[:-1]:
        x_pad, mean, rstd = ff_layer_pallas(n_valid, x_pad, mean, rstd, lp, tile_b)
    out_pad = final_layer_pallas(x_pad, mean, rstd, layer_params[-1],
                                 clf_w_pad, clf_b_pad, tile_b)
    return out_pad[:batch, :num_labels]


# ---------------------------------------------------------------------------
# Pure-JAX reference (mirrors the kernel's intentional bf16-MXU / f32-accum numerics)
# ---------------------------------------------------------------------------
def tabular_model_reference(params, config, numerical, categorical):
    num_cat = len(config["cat_features_idxs"])
    parts = []
    if config["num_features"] > num_cat:
        parts.append(numerical.astype(jnp.float32))
    if num_cat > 0:
        parts.append(embedding_generator(params["emb_tables"], categorical))
    x = jnp.concatenate(parts, axis=1)
    for ff in params["ffs"]:
        mean = jnp.mean(x, axis=0, keepdims=True)
        var = jnp.mean((x - mean) ** 2, axis=0, keepdims=True)
        y = (x - mean) * jax.lax.rsqrt(var + BN_EPS) * ff["gamma"] + ff["beta"]
        yb = y.astype(jnp.bfloat16)
        h1 = jnp.dot(yb, ff["w1"].astype(jnp.bfloat16),
                     preferred_element_type=jnp.float32) + ff["b1"]
        h2 = jnp.dot(yb, ff["w2"].astype(jnp.bfloat16),
                     preferred_element_type=jnp.float32) + ff["b2"]
        x = jax.nn.silu(h1) * h2
    return jnp.dot(x.astype(jnp.bfloat16), params["clf_w"].astype(jnp.bfloat16),
                   preferred_element_type=jnp.float32) + params["clf_b"]


# ---------------------------------------------------------------------------
if __name__ == "__main__":
    config = {
        "num_features": 8,               # 5 numerical + 3 categorical
        "cat_features_idxs": [5, 6, 7],
        "cat_dim": [4, 5, 6],
        "hidden_dim_list": [32, 16],
        "num_labels": 3,
    }

    B = 20                               # not a multiple of the tile -> exercises row masking
    num_cat = len(config["cat_features_idxs"])
    num_numerical = config["num_features"] - num_cat

    key = jax.random.PRNGKey(0)
    key, k_num, k_cat, k_par = jax.random.split(key, 4)

    numerical = jax.random.normal(k_num, (B, num_numerical), jnp.float32)
    categorical = jnp.stack(
        [jax.random.randint(jax.random.fold_in(k_cat, i), (B,), 0, config["cat_dim"][i])
         for i in range(num_cat)], axis=1).astype(jnp.int32)

    params = init_params(k_par, config)

    # tile_b=8 so the toy batch runs a 3-step batch grid (multi-tile stats accumulation
    # + partial last tile).  Production uses the DEFAULT_TILE_B=512 heuristic.
    fwd = jax.jit(functools.partial(tabular_model_forward, config=config, tile_b=8))
    out = jax.block_until_ready(fwd(params, numerical, categorical))

    ref = tabular_model_reference(params, config, numerical, categorical)
    assert out.shape == (B, config["num_labels"])
    assert jnp.allclose(out, ref, atol=1e-2, rtol=1e-2), (
        "Pallas output mismatch vs reference: max abs err = "
        f"{float(jnp.max(jnp.abs(out - ref))):.3e}")
    print("KERNEL_OK")
</pallas_src>

<mosaic_0001>
module attributes {stable_mosaic.version = 11 : i64} {
  func.func @bn_stats_kernel(%arg0: i32, %arg1: memref<1xi32, #tpu.memory_space<smem>>, %arg2: memref<8x128xf32, #tpu.memory_space<vmem>>, %arg3: memref<1x128xf32, #tpu.memory_space<vmem>>, %arg4: memref<1x128xf32, #tpu.memory_space<vmem>>) attributes {dimension_semantics = [#tpu.dimension_semantics<arbitrary>], iteration_bounds = array<i64: 3>, scalar_prefetch = 0 : i64, scratch_operands = 0 : i64, tpu.core_type = #tpu.core_type<tc>, window_params = [{transform_indices = @transform_0, window_bounds = array<i64: 1>}, {transform_indices = @transform_1, window_bounds = array<i64: 8, 128>}, {pipeline_mode = #tpu.pipeline_mode<synchronous>, transform_indices = @transform_2, window_bounds = array<i64: 1, 128>}, {pipeline_mode = #tpu.pipeline_mode<synchronous>, transform_indices = @transform_3, window_bounds = array<i64: 1, 128>}]} {
    %c0_i32 = arith.constant 0 : i32
    %0 = arith.cmpi eq, %arg0, %c0_i32 : i32
    %1 = arith.extui %0 : i1 to i32
    %c0_i32_0 = arith.constant 0 : i32
    %2 = arith.cmpi ne, %1, %c0_i32_0 : i32
    scf.if %2 {
      %cst_13 = arith.constant 0.000000e+00 : f32
      %29 = vector.broadcast %cst_13 : f32 to vector<1x128xf32>
      %c0_14 = arith.constant 0 : index
      %c0_15 = arith.constant 0 : index
      %30 = vector.load %arg3[%c0_14, %c0_15] : memref<1x128xf32, #tpu.memory_space<vmem>>, vector<1x128xf32>
      tpu.vector_store %arg3[%c0_14, %c0_15], %29 {strides = array<i32>} : memref<1x128xf32, #tpu.memory_space<vmem>>, vector<1x128xf32>,
      %cst_16 = arith.constant 0.000000e+00 : f32
      %31 = vector.broadcast %cst_16 : f32 to vector<1x128xf32>
      %c0_17 = arith.constant 0 : index
      %c0_18 = arith.constant 0 : index
      %32 = vector.load %arg4[%c0_17, %c0_18] : memref<1x128xf32, #tpu.memory_space<vmem>>, vector<1x128xf32>
      tpu.vector_store %arg4[%c0_17, %c0_18], %31 {strides = array<i32>} : memref<1x128xf32, #tpu.memory_space<vmem>>, vector<1x128xf32>,
    } else {
    }
    %c0 = arith.constant 0 : index
    %3 = memref.load %arg1[%c0] : memref<1xi32, #tpu.memory_space<smem>>
    %c8_i32 = arith.constant 8 : i32
    %4 = arith.muli %arg0, %c8_i32 : i32
    %5 = tpu.iota {dimensions = array<i32: 0>} : vector<8x1xi32>
    %6 = vector.broadcast %4 : i32 to vector<8x1xi32>
    %7 = arith.addi %6, %5 : vector<8x1xi32>
    %8 = vector.broadcast %3 : i32 to vector<8x1xi32>
    %9 = arith.cmpi slt, %7, %8 : vector<8x1xi32>
    %10 = arith.extui %9 : vector<8x1xi1> to vector<8x1xi32>
    %11 = arith.sitofp %10 : vector<8x1xi32> to vector<8x1xf32>
    %c0_1 = arith.constant 0 : index
    %c0_2 = arith.constant 0 : index
    %12 = vector.load %arg2[%c0_1, %c0_2] : memref<8x128xf32, #tpu.memory_space<vmem>>, vector<8x128xf32>
    %13 = vector.broadcast %11 : vector<8x1xf32> to vector<8x128xf32>
    %14 = arith.mulf %12, %13 : vector<8x128xf32>
    %c0_3 = arith.constant 0 : index
    %c0_4 = arith.constant 0 : index
    %15 = vector.load %arg3[%c0_3, %c0_4] : memref<1x128xf32, #tpu.memory_space<vmem>>, vector<1x128xf32>
    %cst = arith.constant dense<0.000000e+00> : vector<128xf32>
    %16 = vector.multi_reduction <add>, %14, %cst [0] : vector<8x128xf32> to vector<128xf32>
    %17 = vector.shape_cast %16 : vector<128xf32> to vector<1x128xf32>
    %18 = arith.addf %15, %17 : vector<1x128xf32>
    %c0_5 = arith.constant 0 : index
    %c0_6 = arith.constant 0 : index
    %19 = vector.load %arg3[%c0_5, %c0_6] : memref<1x128xf32, #tpu.memory_space<vmem>>, vector<1x128xf32>
    tpu.vector_store %arg3[%c0_5, %c0_6], %18 {strides = array<i32>} : memref<1x128xf32, #tpu.memory_space<vmem>>, vector<1x128xf32>,
    %c0_7 = arith.constant 0 : index
    %c0_8 = arith.constant 0 : index
    %20 = vector.load %arg4[%c0_7, %c0_8] : memref<1x128xf32, #tpu.memory_space<vmem>>, vector<1x128xf32>
    %21 = arith.mulf %14, %14 : vector<8x128xf32>
    %cst_9 = arith.constant dense<0.000000e+00> : vector<128xf32>
    %22 = vector.multi_reduction <add>, %21, %cst_9 [0] : vector<8x128xf32> to vector<128xf32>
    %23 = vector.shape_cast %22 : vector<128xf32> to vector<1x128xf32>
    %24 = arith.addf %20, %23 : vector<1x128xf32>
    %c0_10 = arith.constant 0 : index
    %c0_11 = arith.constant 0 : index
    %25 = vector.load %arg4[%c0_10, %c0_11] : memref<1x128xf32, #tpu.memory_space<vmem>>, vector<1x128xf32>
    tpu.vector_store %arg4[%c0_10, %c0_11], %24 {strides = array<i32>} : memref<1x128xf32, #tpu.memory_space<vmem>>, vector<1x128xf32>,
    %c2_i32 = arith.constant 2 : i32
    %26 = arith.cmpi eq, %arg0, %c2_i32 : i32
    %27 = arith.extui %26 : i1 to i32
    %c0_i32_12 = arith.constant 0 : i32
    %28 = arith.cmpi ne, %27, %c0_i32_12 : i32
    scf.if %28 {
      %29 = arith.sitofp %3 : i32 to f32
      %cst_13 = arith.constant 1.000000e+00 : f32
      %30 = arith.divf %cst_13, %29 : f32
      %c0_14 = arith.constant 0 : index
      %c0_15 = arith.constant 0 : index
      %31 = vector.load %arg3[%c0_14, %c0_15] : memref<1x128xf32, #tpu.memory_space<vmem>>, vector<1x128xf32>
      %32 = vector.broadcast %30 : f32 to vector<1x128xf32>
      %33 = arith.mulf %31, %32 : vector<1x128xf32>
      %c0_16 = arith.constant 0 : index
      %c0_17 = arith.constant 0 : index
      %34 = vector.load %arg4[%c0_16, %c0_17] : memref<1x128xf32, #tpu.memory_space<vmem>>, vector<1x128xf32>
      %35 = vector.broadcast %30 : f32 to vector<1x128xf32>
      %36 = arith.mulf %34, %35 : vector<1x128xf32>
      %37 = arith.mulf %33, %33 : vector<1x128xf32>
      %38 = arith.subf %36, %37 : vector<1x128xf32>
      %cst_18 = arith.constant 0.000000e+00 : f32
      %39 = vector.broadcast %cst_18 : f32 to vector<1x128xf32>
      %40 = arith.maximumf %38, %39 : vector<1x128xf32>
      %c0_19 = arith.constant 0 : index
      %c0_20 = arith.constant 0 : index
      %41 = vector.load %arg3[%c0_19, %c0_20] : memref<1x128xf32, #tpu.memory_space<vmem>>, vector<1x128xf32>
      tpu.vector_store %arg3[%c0_19, %c0_20], %33 {strides = array<i32>} : memref<1x128xf32, #tpu.memory_space<vmem>>, vector<1x128xf32>,
      %cst_21 = arith.constant 9.99999974E-6 : f32
      %42 = vector.broadcast %cst_21 : f32 to vector<1x128xf32>
      %43 = arith.addf %40, %42 : vector<1x128xf32>
      %44 = math.rsqrt %43 : vector<1x128xf32>
      %c0_22 = arith.constant 0 : index
      %c0_23 = arith.constant 0 : index
      %45 = vector.load %arg4[%c0_22, %c0_23] : memref<1x128xf32, #tpu.memory_space<vmem>>, vector<1x128xf32>
      tpu.vector_store %arg4[%c0_22, %c0_23], %44 {strides = array<i32>} : memref<1x128xf32, #tpu.memory_space<vmem>>, vector<1x128xf32>,
    } else {
    }
    return
  }
  func.func @transform_0(%arg0: i32) -> i32 {
    %c0_i32 = arith.constant 0 : i32
    %c0_i32_0 = arith.constant 0 : i32
    return %c0_i32 : i32
  }
  func.func @transform_1(%arg0: i32) -> (i32, i32) {
    %c0_i32 = arith.constant 0 : i32
    %c0_i32_0 = arith.constant 0 : i32
    return %arg0, %c0_i32 : i32, i32
  }
  func.func @transform_2(%arg0: i32) -> (i32, i32) {
    %c0_i32 = arith.constant 0 : i32
    %c0_i32_0 = arith.constant 0 : i32
    %c0_i32_1 = arith.constant 0 : i32
    return %c0_i32, %c0_i32_0 : i32, i32
  }
  func.func @transform_3(%arg0: i32) -> (i32, i32) {
    %c0_i32 = arith.constant 0 : i32
    %c0_i32_0 = arith.constant 0 : i32
    %c0_i32_1 = arith.constant 0 : i32
    return %c0_i32, %c0_i32_0 : i32, i32
  }
}

module attributes {stable_mosaic.version = 11 : i64} {
  func.func @ff_layer_kernel(%arg0: i32, %arg1: memref<1xi32, #tpu.memory_space<smem>>, %arg2: memref<8x128xf32, #tpu.memory_space<vmem>>, %arg3: memref<1x128xf32, #tpu.memory_space<vmem>>, %arg4: memref<1x128xf32, #tpu.memory_space<vmem>>, %arg5: memref<1x128xf32, #tpu.memory_space<vmem>>, %arg6: memref<1x128xf32, #tpu.memory_space<vmem>>, %arg7: memref<128x256xbf16, #tpu.memory_space<vmem>>, %arg8: memref<1x256xf32, #tpu.memory_space<vmem>>, %arg9: memref<8x128xf32, #tpu.memory_space<vmem>>, %arg10: memref<1x128xf32, #tpu.memory_space<vmem>>, %arg11: memref<1x128xf32, #tpu.memory_space<vmem>>) attributes {dimension_semantics = [#tpu.dimension_semantics<arbitrary>], iteration_bounds = array<i64: 3>, scalar_prefetch = 0 : i64, scratch_operands = 0 : i64, tpu.core_type = #tpu.core_type<tc>, window_params = [{transform_indices = @transform_0, window_bounds = array<i64: 1>}, {transform_indices = @transform_1, window_bounds = array<i64: 8, 128>}, {pipeline_mode = #tpu.pipeline_mode<synchronous>, transform_indices = @transform_2, window_bounds = array<i64: 1, 128>}, {pipeline_mode = #tpu.pipeline_mode<synchronous>, transform_indices = @transform_3, window_bounds = array<i64: 1, 128>}, {pipeline_mode = #tpu.pipeline_mode<synchronous>, transform_indices = @transform_4, window_bounds = array<i64: 1, 128>}, {pipeline_mode = #tpu.pipeline_mode<synchronous>, transform_indices = @transform_5, window_bounds = array<i64: 1, 128>}, {pipeline_mode = #tpu.pipeline_mode<synchronous>, transform_indices = @transform_6, window_bounds = array<i64: 128, 256>}, {pipeline_mode = #tpu.pipeline_mode<synchronous>, transform_indices = @transform_7, window_bounds = array<i64: 1, 256>}, {transform_indices = @transform_8, window_bounds = array<i64: 8, 128>}, {pipeline_mode = #tpu.pipeline_mode<synchronous>, transform_indices = @transform_9, window_bounds = array<i64: 1, 128>}, {pipeline_mode = #tpu.pipeline_mode<synchronous>, transform_indices = @transform_10, window_bounds = array<i64: 1, 128>}]} {
    %c0_i32 = arith.constant 0 : i32
    %0 = arith.cmpi eq, %arg0, %c0_i32 : i32
    %1 = arith.extui %0 : i1 to i32
    %c0_i32_0 = arith.constant 0 : i32
    %2 = arith.cmpi ne, %1, %c0_i32_0 : i32
    scf.if %2 {
      %cst_29 = arith.constant 0.000000e+00 : f32
      %57 = vector.broadcast %cst_29 : f32 to vector<1x128xf32>
      %c0_30 = arith.constant 0 : index
      %c0_31 = arith.constant 0 : index
      %58 = vector.load %arg10[%c0_30, %c0_31] : memref<1x128xf32, #tpu.memory_space<vmem>>, vector<1x128xf32>
      tpu.vector_store %arg10[%c0_30, %c0_31], %57 {strides = array<i32>} : memref<1x128xf32, #tpu.memory_space<vmem>>, vector<1x128xf32>,
      %cst_32 = arith.constant 0.000000e+00 : f32
      %59 = vector.broadcast %cst_32 : f32 to vector<1x128xf32>
      %c0_33 = arith.constant 0 : index
      %c0_34 = arith.constant 0 : index
      %60 = vector.load %arg11[%c0_33, %c0_34] : memref<1x128xf32, #tpu.memory_space<vmem>>, vector<1x128xf32>
      tpu.vector_store %arg11[%c0_33, %c0_34], %59 {strides = array<i32>} : memref<1x128xf32, #tpu.memory_space<vmem>>, vector<1x128xf32>,
    } else {
    }
    %c0 = arith.constant 0 : index
    %c0_1 = arith.constant 0 : index
    %3 = vector.load %arg2[%c0, %c0_1] : memref<8x128xf32, #tpu.memory_space<vmem>>, vector<8x128xf32>
    %c0_2 = arith.constant 0 : index
    %c0_3 = arith.constant 0 : index
    %4 = vector.load %arg3[%c0_2, %c0_3] : memref<1x128xf32, #tpu.memory_space<vmem>>, vector<1x128xf32>
    %5 = vector.broadcast %4 : vector<1x128xf32> to vector<8x128xf32>
    %6 = arith.subf %3, %5 : vector<8x128xf32>
    %c0_4 = arith.constant 0 : index
    %c0_5 = arith.constant 0 : index
    %7 = vector.load %arg4[%c0_4, %c0_5] : memref<1x128xf32, #tpu.memory_space<vmem>>, vector<1x128xf32>
    %8 = vector.broadcast %7 : vector<1x128xf32> to vector<8x128xf32>
    %9 = arith.mulf %6, %8 : vector<8x128xf32>
    %c0_6 = arith.constant 0 : index
    %c0_7 = arith.constant 0 : index
    %10 = vector.load %arg5[%c0_6, %c0_7] : memref<1x128xf32, #tpu.memory_space<vmem>>, vector<1x128xf32>
    %11 = vector.broadcast %10 : vector<1x128xf32> to vector<8x128xf32>
    %12 = arith.mulf %9, %11 : vector<8x128xf32>
    %c0_8 = arith.constant 0 : index
    %c0_9 = arith.constant 0 : index
    %13 = vector.load %arg6[%c0_8, %c0_9] : memref<1x128xf32, #tpu.memory_space<vmem>>, vector<1x128xf32>
    %14 = vector.broadcast %13 : vector<1x128xf32> to vector<8x128xf32>
    %15 = arith.addf %12, %14 : vector<8x128xf32>
    %16 = arith.truncf %15 : vector<8x128xf32> to vector<8x128xbf16>
    %c0_10 = arith.constant 0 : index
    %c0_11 = arith.constant 0 : index
    %17 = vector.load %arg7[%c0_10, %c0_11] : memref<128x256xbf16, #tpu.memory_space<vmem>>, vector<128x256xbf16>
    %cst = arith.constant dense<0.000000e+00> : vector<8x256xf32>
    %18 = tpu.matmul %16, %17, %cst {dimension_numbers = #tpu.dot_dimension_numbers<[1], [0], [0], [1], [0, 0, 1, 1], [], []>} : vector<8x128xbf16>, vector<128x256xbf16>, vector<8x256xf32> -> vector<8x256xf32>
    %c0_12 = arith.constant 0 : index
    %c0_13 = arith.constant 0 : index
    %19 = vector.load %arg8[%c0_12, %c0_13] : memref<1x256xf32, #tpu.memory_space<vmem>>, vector<1x256xf32>
    %20 = vector.broadcast %19 : vector<1x256xf32> to vector<8x256xf32>
    %21 = arith.addf %18, %20 : vector<8x256xf32>
    %22 = vector.extract_strided_slice %21 {offsets = [0, 0], sizes = [8, 128], strides = [1, 1]} : vector<8x256xf32> to vector<8x128xf32>
    %23 = vector.extract_strided_slice %21 {offsets = [0, 128], sizes = [8, 128], strides = [1, 1]} : vector<8x256xf32> to vector<8x128xf32>
    %24 = arith.negf %22 : vector<8x128xf32>
    %25 = math.exp %24 : vector<8x128xf32>
    %cst_14 = arith.constant 1.000000e+00 : f32
    %26 = vector.broadcast %cst_14 : f32 to vector<8x128xf32>
    %27 = arith.addf %26, %25 : vector<8x128xf32>
    %28 = arith.divf %26, %27 : vector<8x128xf32>
    %29 = arith.mulf %22, %28 : vector<8x128xf32>
    %30 = arith.mulf %29, %23 : vector<8x128xf32>
    %c0_15 = arith.constant 0 : index
    %c0_16 = arith.constant 0 : index
    %31 = vector.load %arg9[%c0_15, %c0_16] : memref<8x128xf32, #tpu.memory_space<vmem>>, vector<8x128xf32>
    tpu.vector_store %arg9[%c0_15, %c0_16], %30 {strides = array<i32>} : memref<8x128xf32, #tpu.memory_space<vmem>>, vector<8x128xf32>,
    %c0_17 = arith.constant 0 : index
    %32 = memref.load %arg1[%c0_17] : memref<1xi32, #tpu.memory_space<smem>>
    %c8_i32 = arith.constant 8 : i32
    %33 = arith.muli %arg0, %c8_i32 : i32
    %34 = tpu.iota {dimensions = array<i32: 0>} : vector<8x1xi32>
    %35 = vector.broadcast %33 : i32 to vector<8x1xi32>
    %36 = arith.addi %35, %34 : vector<8x1xi32>
    %37 = vector.broadcast %32 : i32 to vector<8x1xi32>
    %38 = arith.cmpi slt, %36, %37 : vector<8x1xi32>
    %39 = arith.extui %38 : vector<8x1xi1> to vector<8x1xi32>
    %40 = arith.sitofp %39 : vector<8x1xi32> to vector<8x1xf32>
    %41 = vector.broadcast %40 : vector<8x1xf32> to vector<8x128xf32>
    %42 = arith.mulf %30, %41 : vector<8x128xf32>
    %c0_18 = arith.constant 0 : index
    %c0_19 = arith.constant 0 : index
    %43 = vector.load %arg10[%c0_18, %c0_19] : memref<1x128xf32, #tpu.memory_space<vmem>>, vector<1x128xf32>
    %cst_20 = arith.constant dense<0.000000e+00> : vector<128xf32>
    %44 = vector.multi_reduction <add>, %42, %cst_20 [0] : vector<8x128xf32> to vector<128xf32>
    %45 = vector.shape_cast %44 : vector<128xf32> to vector<1x128xf32>
    %46 = arith.addf %43, %45 : vector<1x128xf32>
    %c0_21 = arith.constant 0 : index
    %c0_22 = arith.constant 0 : index
    %47 = vector.load %arg10[%c0_21, %c0_22] : memref<1x128xf32, #tpu.memory_space<vmem>>, vector<1x128xf32>
    tpu.vector_store %arg10[%c0_21, %c0_22], %46 {strides = array<i32>} : memref<1x128xf32, #tpu.memory_space<vmem>>, vector<1x128xf32>,
    %c0_23 = arith.constant 0 : index
    %c0_24 = arith.constant 0 : index
    %48 = vector.load %arg11[%c0_23, %c0_24] : memref<1x128xf32, #tpu.memory_space<vmem>>, vector<1x128xf32>
    %49 = arith.mulf %42, %42 : vector<8x128xf32>
    %cst_25 = arith.constant dense<0.000000e+00> : vector<128xf32>
    %50 = vector.multi_reduction <add>, %49, %cst_25 [0] : vector<8x128xf32> to vector<128xf32>
    %51 = vector.shape_cast %50 : vector<128xf32> to vector<1x128xf32>
    %52 = arith.addf %48, %51 : vector<1x128xf32>
    %c0_26 = arith.constant 0 : index
    %c0_27 = arith.constant 0 : index
    %53 = vector.load %arg11[%c0_26, %c0_27] : memref<1x128xf32, #tpu.memory_space<vmem>>, vector<1x128xf32>
    tpu.vector_store %arg11[%c0_26, %c0_27], %52 {strides = array<i32>} : memref<1x128xf32, #tpu.memory_space<vmem>>, vector<1x128xf32>,
    %c2_i32 = arith.constant 2 : i32
    %54 = arith.cmpi eq, %arg0, %c2_i32 : i32
    %55 = arith.extui %54 : i1 to i32
    %c0_i32_28 = arith.constant 0 : i32
    %56 = arith.cmpi ne, %55, %c0_i32_28 : i32
    scf.if %56 {
      %57 = arith.sitofp %32 : i32 to f32
      %cst_29 = arith.constant 1.000000e+00 : f32
      %58 = arith.divf %cst_29, %57 : f32
      %c0_30 = arith.constant 0 : index
      %c0_31 = arith.constant 0 : index
      %59 = vector.load %arg10[%c0_30, %c0_31] : memref<1x128xf32, #tpu.memory_space<vmem>>, vector<1x128xf32>
      %60 = vector.broadcast %58 : f32 to vector<1x128xf32>
      %61 = arith.mulf %59, %60 : vector<1x128xf32>
      %c0_32 = arith.constant 0 : index
      %c0_33 = arith.constant 0 : index
      %62 = vector.load %arg11[%c0_32, %c0_33] : memref<1x128xf32, #tpu.memory_space<vmem>>, vector<1x128xf32>
      %63 = vector.broadcast %58 : f32 to vector<1x128xf32>
      %64 = arith.mulf %62, %63 : vector<1x128xf32>
      %65 = arith.mulf %61, %61 : vector<1x128xf32>
      %66 = arith.subf %64, %65 : vector<1x128xf32>
      %cst_34 = arith.constant 0.000000e+00 : f32
      %67 = vector.broadcast %cst_34 : f32 to vector<1x128xf32>
      %68 = arith.maximumf %66, %67 : vector<1x128xf32>
      %c0_35 = arith.constant 0 : index
      %c0_36 = arith.constant 0 : index
      %69 = vector.load %arg10[%c0_35, %c0_36] : memref<1x128xf32, #tpu.memory_space<vmem>>, vector<1x128xf32>
      tpu.vector_store %arg10[%c0_35, %c0_36], %61 {strides = array<i32>} : memref<1x128xf32, #tpu.memory_space<vmem>>, vector<1x128xf32>,
      %cst_37 = arith.constant 9.99999974E-6 : f32
      %70 = vector.broadcast %cst_37 : f32 to vector<1x128xf32>
      %71 = arith.addf %68, %70 : vector<1x128xf32>
      %72 = math.rsqrt %71 : vector<1x128xf32>
      %c0_38 = arith.constant 0 : index
      %c0_39 = arith.constant 0 : index
      %73 = vector.load %arg11[%c0_38, %c0_39] : memref<1x128xf32, #tpu.memory_space<vmem>>, vector<1x128xf32>
      tpu.vector_store %arg11[%c0_38, %c0_39], %72 {strides = array<i32>} : memref<1x128xf32, #tpu.memory_space<vmem>>, vector<1x128xf32>,
    } else {
    }
    return
  }
  func.func @transform_0(%arg0: i32) -> i32 {
    %c0_i32 = arith.constant 0 : i32
    %c0_i32_0 = arith.constant 0 : i32
    return %c0_i32 : i32
  }
  func.func @transform_1(%arg0: i32) -> (i32, i32) {
    %c0_i32 = arith.constant 0 : i32
    %c0_i32_0 = arith.constant 0 : i32
    return %arg0, %c0_i32 : i32, i32
  }
  func.func @transform_2(%arg0: i32) -> (i32, i32) {
    %c0_i32 = arith.constant 0 : i32
    %c0_i32_0 = arith.constant 0 : i32
    %c0_i32_1 = arith.constant 0 : i32
    return %c0_i32, %c0_i32_0 : i32, i32
  }
  func.func @transform_3(%arg0: i32) -> (i32, i32) {
    %c0_i32 = arith.constant 0 : i32
    %c0_i32_0 = arith.constant 0 : i32
    %c0_i32_1 = arith.constant 0 : i32
    return %c0_i32, %c0_i32_0 : i32, i32
  }
  func.func @transform_4(%arg0: i32) -> (i32, i32) {
    %c0_i32 = arith.constant 0 : i32
    %c0_i32_0 = arith.constant 0 : i32
    %c0_i32_1 = arith.constant 0 : i32
    return %c0_i32, %c0_i32_0 : i32, i32
  }
  func.func @transform_5(%arg0: i32) -> (i32, i32) {
    %c0_i32 = arith.constant 0 : i32
    %c0_i32_0 = arith.constant 0 : i32
    %c0_i32_1 = arith.constant 0 : i32
    return %c0_i32, %c0_i32_0 : i32, i32
  }
  func.func @transform_6(%arg0: i32) -> (i32, i32) {
    %c0_i32 = arith.constant 0 : i32
    %c0_i32_0 = arith.constant 0 : i32
    %c0_i32_1 = arith.constant 0 : i32
    return %c0_i32, %c0_i32_0 : i32, i32
  }
  func.func @transform_7(%arg0: i32) -> (i32, i32) {
    %c0_i32 = arith.constant 0 : i32
    %c0_i32_0 = arith.constant 0 : i32
    %c0_i32_1 = arith.constant 0 : i32
    return %c0_i32, %c0_i32_0 : i32, i32
  }
  func.func @transform_8(%arg0: i32) -> (i32, i32) {
    %c0_i32 = arith.constant 0 : i32
    %c0_i32_0 = arith.constant 0 : i32
    return %arg0, %c0_i32 : i32, i32
  }
  func.func @transform_9(%arg0: i32) -> (i32, i32) {
    %c0_i32 = arith.constant 0 : i32
    %c0_i32_0 = arith.constant 0 : i32
    %c0_i32_1 = arith.constant 0 : i32
    return %c0_i32, %c0_i32_0 : i32, i32
  }
  func.func @transform_10(%arg0: i32) -> (i32, i32) {
    %c0_i32 = arith.constant 0 : i32
    %c0_i32_0 = arith.constant 0 : i32
    %c0_i32_1 = arith.constant 0 : i32
    return %c0_i32, %c0_i32_0 : i32, i32
  }
}

module attributes {stable_mosaic.version = 11 : i64} {
  func.func @final_layer_kernel(%arg0: i32, %arg1: memref<8x128xf32, #tpu.memory_space<vmem>>, %arg2: memref<1x128xf32, #tpu.memory_space<vmem>>, %arg3: memref<1x128xf32, #tpu.memory_space<vmem>>, %arg4: memref<1x128xf32, #tpu.memory_space<vmem>>, %arg5: memref<1x128xf32, #tpu.memory_space<vmem>>, %arg6: memref<128x256xbf16, #tpu.memory_space<vmem>>, %arg7: memref<1x256xf32, #tpu.memory_space<vmem>>, %arg8: memref<128x128xbf16, #tpu.memory_space<vmem>>, %arg9: memref<1x128xf32, #tpu.memory_space<vmem>>, %arg10: memref<8x128xf32, #tpu.memory_space<vmem>>) attributes {dimension_semantics = [#tpu.dimension_semantics<parallel>], iteration_bounds = array<i64: 3>, scalar_prefetch = 0 : i64, scratch_operands = 0 : i64, tpu.core_type = #tpu.core_type<tc>, window_params = [{transform_indices = @transform_0, window_bounds = array<i64: 8, 128>}, {pipeline_mode = #tpu.pipeline_mode<synchronous>, transform_indices = @transform_1, window_bounds = array<i64: 1, 128>}, {pipeline_mode = #tpu.pipeline_mode<synchronous>, transform_indices = @transform_2, window_bounds = array<i64: 1, 128>}, {pipeline_mode = #tpu.pipeline_mode<synchronous>, transform_indices = @transform_3, window_bounds = array<i64: 1, 128>}, {pipeline_mode = #tpu.pipeline_mode<synchronous>, transform_indices = @transform_4, window_bounds = array<i64: 1, 128>}, {pipeline_mode = #tpu.pipeline_mode<synchronous>, transform_indices = @transform_5, window_bounds = array<i64: 128, 256>}, {pipeline_mode = #tpu.pipeline_mode<synchronous>, transform_indices = @transform_6, window_bounds = array<i64: 1, 256>}, {pipeline_mode = #tpu.pipeline_mode<synchronous>, transform_indices = @transform_7, window_bounds = array<i64: 128, 128>}, {pipeline_mode = #tpu.pipeline_mode<synchronous>, transform_indices = @transform_8, window_bounds = array<i64: 1, 128>}, {transform_indices = @transform_9, window_bounds = array<i64: 8, 128>}]} {
    %c0 = arith.constant 0 : index
    %c0_0 = arith.constant 0 : index
    %0 = vector.load %arg1[%c0, %c0_0] : memref<8x128xf32, #tpu.memory_space<vmem>>, vector<8x128xf32>
    %c0_1 = arith.constant 0 : index
    %c0_2 = arith.constant 0 : index
    %1 = vector.load %arg2[%c0_1, %c0_2] : memref<1x128xf32, #tpu.memory_space<vmem>>, vector<1x128xf32>
    %2 = vector.broadcast %1 : vector<1x128xf32> to vector<8x128xf32>
    %3 = arith.subf %0, %2 : vector<8x128xf32>
    %c0_3 = arith.constant 0 : index
    %c0_4 = arith.constant 0 : index
    %4 = vector.load %arg3[%c0_3, %c0_4] : memref<1x128xf32, #tpu.memory_space<vmem>>, vector<1x128xf32>
    %5 = vector.broadcast %4 : vector<1x128xf32> to vector<8x128xf32>
    %6 = arith.mulf %3, %5 : vector<8x128xf32>
    %c0_5 = arith.constant 0 : index
    %c0_6 = arith.constant 0 : index
    %7 = vector.load %arg4[%c0_5, %c0_6] : memref<1x128xf32, #tpu.memory_space<vmem>>, vector<1x128xf32>
    %8 = vector.broadcast %7 : vector<1x128xf32> to vector<8x128xf32>
    %9 = arith.mulf %6, %8 : vector<8x128xf32>
    %c0_7 = arith.constant 0 : index
    %c0_8 = arith.constant 0 : index
    %10 = vector.load %arg5[%c0_7, %c0_8] : memref<1x128xf32, #tpu.memory_space<vmem>>, vector<1x128xf32>
    %11 = vector.broadcast %10 : vector<1x128xf32> to vector<8x128xf32>
    %12 = arith.addf %9, %11 : vector<8x128xf32>
    %13 = arith.truncf %12 : vector<8x128xf32> to vector<8x128xbf16>
    %c0_9 = arith.constant 0 : index
    %c0_10 = arith.constant 0 : index
    %14 = vector.load %arg6[%c0_9, %c0_10] : memref<128x256xbf16, #tpu.memory_space<vmem>>, vector<128x256xbf16>
    %cst = arith.constant dense<0.000000e+00> : vector<8x256xf32>
    %15 = tpu.matmul %13, %14, %cst {dimension_numbers = #tpu.dot_dimension_numbers<[1], [0], [0], [1], [0, 0, 1, 1], [], []>} : vector<8x128xbf16>, vector<128x256xbf16>, vector<8x256xf32> -> vector<8x256xf32>
    %c0_11 = arith.constant 0 : index
    %c0_12 = arith.constant 0 : index
    %16 = vector.load %arg7[%c0_11, %c0_12] : memref<1x256xf32, #tpu.memory_space<vmem>>, vector<1x256xf32>
    %17 = vector.broadcast %16 : vector<1x256xf32> to vector<8x256xf32>
    %18 = arith.addf %15, %17 : vector<8x256xf32>
    %19 = vector.extract_strided_slice %18 {offsets = [0, 0], sizes = [8, 128], strides = [1, 1]} : vector<8x256xf32> to vector<8x128xf32>
    %20 = vector.extract_strided_slice %18 {offsets = [0, 128], sizes = [8, 128], strides = [1, 1]} : vector<8x256xf32> to vector<8x128xf32>
    %21 = arith.negf %19 : vector<8x128xf32>
    %22 = math.exp %21 : vector<8x128xf32>
    %cst_13 = arith.constant 1.000000e+00 : f32
    %23 = vector.broadcast %cst_13 : f32 to vector<8x128xf32>
    %24 = arith.addf %23, %22 : vector<8x128xf32>
    %25 = arith.divf %23, %24 : vector<8x128xf32>
    %26 = arith.mulf %19, %25 : vector<8x128xf32>
    %27 = arith.mulf %26, %20 : vector<8x128xf32>
    %28 = arith.truncf %27 : vector<8x128xf32> to vector<8x128xbf16>
    %c0_14 = arith.constant 0 : index
    %c0_15 = arith.constant 0 : index
    %29 = vector.load %arg8[%c0_14, %c0_15] : memref<128x128xbf16, #tpu.memory_space<vmem>>, vector<128x128xbf16>
    %cst_16 = arith.constant dense<0.000000e+00> : vector<8x128xf32>
    %30 = tpu.matmul %28, %29, %cst_16 {dimension_numbers = #tpu.dot_dimension_numbers<[1], [0], [0], [1], [0, 0, 1, 1], [], []>} : vector<8x128xbf16>, vector<128x128xbf16>, vector<8x128xf32> -> vector<8x128xf32>
    %c0_17 = arith.constant 0 : index
    %c0_18 = arith.constant 0 : index
    %31 = vector.load %arg9[%c0_17, %c0_18] : memref<1x128xf32, #tpu.memory_space<vmem>>, vector<1x128xf32>
    %32 = vector.broadcast %31 : vector<1x128xf32> to vector<8x128xf32>
    %33 = arith.addf %30, %32 : vector<8x128xf32>
    %c0_19 = arith.constant 0 : index
    %c0_20 = arith.constant 0 : index
    %34 = vector.load %arg10[%c0_19, %c0_20] : memref<8x128xf32, #tpu.memory_space<vmem>>, vector<8x128xf32>
    tpu.vector_store %arg10[%c0_19, %c0_20], %33 {strides = array<i32>} : memref<8x128xf32, #tpu.memory_space<vmem>>, vector<8x128xf32>,
    return
  }
  func.func @transform_0(%arg0: i32) -> (i32, i32) {
    %c0_i32 = arith.constant 0 : i32
    %c0_i32_0 = arith.constant 0 : i32
    return %arg0, %c0_i32 : i32, i32
  }
  func.func @transform_1(%arg0: i32) -> (i32, i32) {
    %c0_i32 = arith.constant 0 : i32
    %c0_i32_0 = arith.constant 0 : i32
    %c0_i32_1 = arith.constant 0 : i32
    return %c0_i32, %c0_i32_0 : i32, i32
  }
  func.func @transform_2(%arg0: i32) -> (i32, i32) {
    %c0_i32 = arith.constant 0 : i32
    %c0_i32_0 = arith.constant 0 : i32
    %c0_i32_1 = arith.constant 0 : i32
    return %c0_i32, %c0_i32_0 : i32, i32
  }
  func.func @transform_3(%arg0: i32) -> (i32, i32) {
    %c0_i32 = arith.constant 0 : i32
    %c0_i32_0 = arith.constant 0 : i32
    %c0_i32_1 = arith.constant 0 : i32
    return %c0_i32, %c0_i32_0 : i32, i32
  }
  func.func @transform_4(%arg0: i32) -> (i32, i32) {
    %c0_i32 = arith.constant 0 : i32
    %c0_i32_0 = arith.constant 0 : i32
    %c0_i32_1 = arith.constant 0 : i32
    return %c0_i32, %c0_i32_0 : i32, i32
  }
  func.func @transform_5(%arg0: i32) -> (i32, i32) {
    %c0_i32 = arith.constant 0 : i32
    %c0_i32_0 = arith.constant 0 : i32
    %c0_i32_1 = arith.constant 0 : i32
    return %c0_i32, %c0_i32_0 : i32, i32
  }
  func.func @transform_6(%arg0: i32) -> (i32, i32) {
    %c0_i32 = arith.constant 0 : i32
    %c0_i32_0 = arith.constant 0 : i32
    %c0_i32_1 = arith.constant 0 : i32
    return %c0_i32, %c0_i32_0 : i32, i32
  }
  func.func @transform_7(%arg0: i32) -> (i32, i32) {
    %c0_i32 = arith.constant 0 : i32
    %c0_i32_0 = arith.constant 0 : i32
    %c0_i32_1 = arith.constant 0 : i32
    return %c0_i32, %c0_i32_0 : i32, i32
  }
  func.func @transform_8(%arg0: i32) -> (i32, i32) {
    %c0_i32 = arith.constant 0 : i32
    %c0_i32_0 = arith.constant 0 : i32
    %c0_i32_1 = arith.constant 0 : i32
    return %c0_i32, %c0_i32_0 : i32, i32
  }
  func.func @transform_9(%arg0: i32) -> (i32, i32) {
    %c0_i32 = arith.constant 0 : i32
    %c0_i32_0 = arith.constant 0 : i32
    return %arg0, %c0_i32 : i32, i32
  }
}

</mosaic_0001>

<llo_original>
// kernel: tabular_model_forward.3
$region0: #{tabular_model_forward.3}
  #allocation0 [shape = 'u32[]', space=smem, size = 0x4, offset = 0x4, fixed_abs, tag = 'smem constant byte address 0x4 - core index']
  #allocation1 [shape = 'u32[144,128]{1,0:T(1,128)}', space=vmem, size = 0x12000, scoped, tag = 'internal scratch']
  #allocation2 [shape = 's32[1]{0:T(128)S(6)}', space=smem, size = 0x200, scoped, tag = 'scoped memory for tabular_model_forward.3']
  %s0 = inlined_call_operand.<no memory space> [shape: s32[1], index: 0, kind: input, shape index: {}]
  %s1 = inlined_call_operand.vmem [shape: f32[24,128], index: 1, kind: input, shape index: {}]
  %s2 = inlined_call_operand.vmem [shape: f32[1,128], index: 2, kind: output, shape index: {0}]
  %s3 = inlined_call_operand.vmem [shape: f32[1,128], index: 3, kind: output, shape index: {1}]
  %4 = xla_tuple %s2, %s3
  %s5 = sld [smem:[#allocation0]]
  $region57: #{tabular_model_forward.3} parent=0
    _
  %s7 = ssub.s32 1, %s5
  %s8 = scalar_select 0, %s7, %s5
  %9 = sst [smem:[#allocation2]] %s0
  loop: start=0, step=1, limit=5
  $region2: #{tabular_model_forward.3} parent=0 // loop_pre_header
    _
  $region3: #{tabular_model_forward.3} parent=0 // loop_header
    %s11 = sphi 0, %s15
    %p12 = scmp.ge.s32.totalorder %s11, 5
    %s19 = sphi 0, %s19
    %s21 = sphi 0, %s19
    %s22 = sphi 0, %s21
    %s36 = sphi 0, %s22
    %s42 = sphi 0, %s44
    %s45 = sphi 0, %s42
    %s46 = sphi 0, %s45
    %s62 = sphi 0, %s46
    %s66 = sphi 0, %s66
    %s68 = sphi 0, %s66
    %s69 = sphi 0, %s68
    %s83 = sphi 0, %s69
    %s87 = sphi 0, %s87
    %s89 = sphi 0, %s87
    %s90 = sphi 0, %s89
    %s104 = sphi 0, %s90
  $region4: #{tabular_model_forward.3} parent=0 // loop_header_branch
    %14 = sbr.rel (%p12) target = $region8
  $region5: #{tabular_model_forward.3} parent=0 // loop_body
    %s16 = ssub.s32 %s11, 1
    %s17 = ssub.s32 %s11, 2
    %s18 = sadd.s32 %s11, 1
    %s20 = sadd.s32 %s19, 1
    %p23 = scmp.eq.s32.totalorder %s11, 2
    %p24 = scmp.ne.s32.totalorder %s19, %s21
    %p25 = scmp.eq.s32.totalorder %s11, 0
    %p26 = por %p24, %p25
    %p27 = scmp.ne.s32.totalorder %s19, %s21
    %p28 = scmp.eq.s32.totalorder %s16, 2
    %p29 = por %p27, %p28
    %p30 = scmp.ne.s32.totalorder %s21, %s22
    %p31 = scmp.eq.s32.totalorder %s16, 0
    %p32 = por %p30, %p31
    %p33 = scmp.ne.s32.totalorder %s21, %s22
    %p34 = scmp.eq.s32.totalorder %s17, 2
    %p35 = por %p33, %p34
    %p37 = scmp.ne.s32.totalorder %s22, %s36
    %p38 = scmp.eq.s32.totalorder %s17, 0
    %p39 = por %p37, %p38
    %s40 = ssub.s32 %s11, %s18
    %p41 = scmp.eq.s32.totalorder %s40, 0
    %s43 = sadd.s32 %s42, 1
    %s44 = scalar_select %p41, %s42, %s43
    %p47 = pneg %p41
    %p48 = scmp.eq.s32.totalorder %s11, 2
    %p49 = por %p47, %p48
    %p50 = scmp.ne.s32.totalorder %s42, %s45
    %p51 = scmp.eq.s32.totalorder %s11, 0
    %p52 = por %p50, %p51
    %p53 = scmp.ne.s32.totalorder %s42, %s45
    %p54 = scmp.eq.s32.totalorder %s16, 2
    %p55 = por %p53, %p54
    %p56 = scmp.ne.s32.totalorder %s45, %s46
    %p57 = scmp.eq.s32.totalorder %s16, 0
    %p58 = por %p56, %p57
    %p59 = scmp.ne.s32.totalorder %s45, %s46
    %p60 = scmp.eq.s32.totalorder %s17, 2
    %p61 = por %p59, %p60
    %p63 = scmp.ne.s32.totalorder %s46, %s62
    %p64 = scmp.eq.s32.totalorder %s17, 0
    %p65 = por %p63, %p64
    %s67 = sadd.s32 %s66, 1
    %p70 = scmp.eq.s32.totalorder %s11, 2
    %p71 = scmp.ne.s32.totalorder %s66, %s68
    %p72 = scmp.eq.s32.totalorder %s11, 0
    %p73 = por %p71, %p72
    %p74 = scmp.ne.s32.totalorder %s66, %s68
    %p75 = scmp.eq.s32.totalorder %s16, 2
    %p76 = por %p74, %p75
    %p77 = scmp.ne.s32.totalorder %s68, %s69
    %p78 = scmp.eq.s32.totalorder %s16, 0
    %p79 = por %p77, %p78
    %p80 = scmp.ne.s32.totalorder %s68, %s69
    %p81 = scmp.eq.s32.totalorder %s17, 2
    %p82 = por %p80, %p81
    %p84 = scmp.ne.s32.totalorder %s69, %s83
    %p85 = scmp.eq.s32.totalorder %s17, 0
    %p86 = por %p84, %p85
    %s88 = sadd.s32 %s87, 1
    %p91 = scmp.eq.s32.totalorder %s11, 2
    %p92 = scmp.ne.s32.totalorder %s87, %s89
    %p93 = scmp.eq.s32.totalorder %s11, 0
    %p94 = por %p92, %p93
    %p95 = scmp.ne.s32.totalorder %s87, %s89
    %p96 = scmp.eq.s32.totalorder %s16, 2
    %p97 = por %p95, %p96
    %p98 = scmp.ne.s32.totalorder %s89, %s90
    %p99 = scmp.eq.s32.totalorder %s16, 0
    %p100 = por %p98, %p99
    %p101 = scmp.ne.s32.totalorder %s89, %s90
    %p102 = scmp.eq.s32.totalorder %s17, 2
    %p103 = por %p101, %p102
    %p105 = scmp.ne.s32.totalorder %s90, %s104
    %p106 = scmp.eq.s32.totalorder %s17, 0
    %p107 = por %p105, %p106
    %p108 = scmp.le.s32.totalorder 1, %s11
    %p109 = scmp.lt.s32.totalorder %s11, 4
    %p110 = pnand %p108, %p109
    %p111 = pneg %p110
    // Predicated region
    $region9: #{tabular_model_forward.3} parent=5 // pred_check
      _
    $region10: #{tabular_model_forward.3} parent=5 // pred_check_branch
      %113 = sbr.rel (%p110) target = $region12
    $region11: #{tabular_model_forward.3} parent=5 // pred_region
      %s114 = ssub.s32 %s11, 1
      // Predicated region
      $region13: #{tabular_model_forward.3} parent=11 // pred_check
        %p115 = pneg %p32
      $region14: #{tabular_model_forward.3} parent=11 // pred_check_branch
        %117 = sbr.rel (%p115) target = $region16
      $region15: #{tabular_model_forward.3} parent=11 // pred_region
        _
      $region16: #{tabular_model_forward.3} parent=11 // pred_fallthru
        _
    $region12: #{tabular_model_forward.3} parent=5 // pred_fallthru
      _
    %p118 = scmp.lt.s32.totalorder %s11, 3
    // Predicated region
    $region17: #{tabular_model_forward.3} parent=5 // pred_check
      %p119 = pneg %p118
    $region18: #{tabular_model_forward.3} parent=5 // pred_check_branch
      %121 = sbr.rel (%p119) target = $region20
    $region19: #{tabular_model_forward.3} parent=5 // pred_region
      // Predicated region
      $region21: #{tabular_model_forward.3} parent=19 // pred_check
        %p122 = pneg %p52
      $region22: #{tabular_model_forward.3} parent=19 // pred_check_branch
        %124 = sbr.rel (%p122) target = $region24
      $region23: #{tabular_model_forward.3} parent=19 // pred_region
        %p125 = scmp.lt.s32.totalorder %s11, 2
        %s126 = scalar_select %p125, %s11, 2
        %s127 = smul.addr %s126, 8
        %s128 = scalar_lea.vmem %s1, %s127
      $region24: #{tabular_model_forward.3} parent=19 // pred_fallthru
        _
    $region20: #{tabular_model_forward.3} parent=5 // pred_fallthru
      _
    %p129 = scmp.le.s32.totalorder 1, %s11
    %p130 = scmp.lt.s32.totalorder %s11, 4
    %p131 = pnand %p129, %p130
    %p132 = pneg %p131
    // Predicated region
    $region25: #{tabular_model_forward.3} parent=5 // pred_check
      _
    $region26: #{tabular_model_forward.3} parent=5 // pred_check_branch
      %134 = sbr.rel (%p131) target = $region28
    $region27: #{tabular_model_forward.3} parent=5 // pred_region
      %s135 = ssub.s32 %s11, 1
      %p136 = pneg %p32
      %p137 = pneg %p29
      %p138 = scmp.lt.s32.totalorder %s16, 2
      %s139 = scalar_select %p138, %s16, 2
      %s140 = smul.addr %s139, 8
      %s141 = scalar_lea.vmem %s1, %s140
      %p142 = pneg %p58
      %p143 = pneg %p55
      %p144 = pneg %p79
      %p145 = pneg %p76
      %p146 = pneg %p100
      %p147 = pneg %p97
      %p148 = scmp.lt.s32.totalorder %s16, 2
      %s149 = scalar_select %p148, %s16, 2
      %s150 = smul.addr %s149, 8
      %s151 = scalar_lea.vmem %s1, %s150
      %p152 = scmp.eq.s32.totalorder %s16, 0
      // Predicated region
      $region29: #{tabular_model_forward.3} parent=27 // pred_check
        %p153 = pneg %p152
      $region30: #{tabular_model_forward.3} parent=27 // pred_check_branch
        %155 = sbr.rel (%p153) target = $region32
      $region31: #{tabular_model_forward.3} parent=27 // pred_region
        %156 = vst [vmem:[%s2] sm:$0x1] 0.0
        %157 = vst [vmem:[%s3] sm:$0x1] 0.0
      $region32: #{tabular_model_forward.3} parent=27 // pred_fallthru
        _
      %s158 = sld [smem:[#allocation2]]
      %s159 = smul.u32 %s16, 8
      %v160 = vlaneseq
      %v161 = vshrl.u32 %v160, 7
      %v162 = vstv %s159
      %v163 = vadd.s32 %v162, %v161
      %v164 = vstv %s158
      %vm165 = vcmp.lt.s32.totalorder %v163, %v164
      %v166 = vsel %vm165, 1, 0
      %v167 = vcvt.s32.f32 %v166
      %v168 = vld [vmem:[%s151] sm:$0xff]
      %v169 = vmul.f32 %v168, %v167
      %v170 = vld [vmem:[%s2] sm:$0x1]
      %v171 = vrot.slane %v169, 4
      %v172 = vadd.f32 %v169, %v171
      %v173 = vrot.slane %v172, 2
      %v174 = vadd.f32 %v172, %v173
      %v175 = vrot.slane %v174, 1
      %v176 = vadd.f32 %v174, %v175
      %v177 = vadd.f32 %v170, %v176
      %178 = vst [vmem:[%s2] sm:$0x1] %v177
      %v179 = vld [vmem:[%s3] sm:$0x1]
      %v180 = vmul.f32 %v169, %v169
      %v181 = vrot.slane %v180, 4
      %v182 = vadd.f32 %v180, %v181
      %v183 = vrot.slane %v182, 2
      %v184 = vadd.f32 %v182, %v183
      %v185 = vrot.slane %v184, 1
      %v186 = vadd.f32 %v184, %v185
      %v187 = vadd.f32 %v179, %v186
      %188 = vst [vmem:[%s3] sm:$0x1] %v187
      %p189 = scmp.eq.s32.totalorder %s16, 2
      // Predicated region
      $region33: #{tabular_model_forward.3} parent=27 // pred_check
        %p190 = pneg %p189
      $region34: #{tabular_model_forward.3} parent=27 // pred_check_branch
        %192 = sbr.rel (%p190) target = $region36
      $region35: #{tabular_model_forward.3} parent=27 // pred_region
        %s193 = scvt.s32.f32 %s158
        %v194 = vstv %s193
        %v195 = vrcp.pop %v194
        %s196 = vtos %v195
        %v197 = vld [vmem:[%s2] sm:$0x1]
        %v198 = vstv %s196
        %v199 = vmul.f32 %v197, %v198
        %v200 = vld [vmem:[%s3] sm:$0x1]
        %v201 = vmul.f32 %v200, %v198
        %v202 = vmul.f32 %v199, %v199
        %v203 = vsub.f32 %v201, %v202
        %v204 = vmax.f32 %v203, 0.0
        %205 = vst [vmem:[%s2] sm:$0x1] %v199
        %v206 = vadd.f32 %v204, 1e-05
        %v207 = vrsqrt.pop %v206
        %208 = vst [vmem:[%s3] sm:$0x1] %v207
      $region36: #{tabular_model_forward.3} parent=27 // pred_fallthru
        _
      // Predicated region
      $region37: #{tabular_model_forward.3} parent=27 // pred_check
        %p209 = pneg %p76
      $region38: #{tabular_model_forward.3} parent=27 // pred_check_branch
        %211 = sbr.rel (%p209) target = $region40
      $region39: #{tabular_model_forward.3} parent=27 // pred_region
        _
      $region40: #{tabular_model_forward.3} parent=27 // pred_fallthru
        _
      // Predicated region
      $region41: #{tabular_model_forward.3} parent=27 // pred_check
        %p212 = pneg %p97
      $region42: #{tabular_model_forward.3} parent=27 // pred_check_branch
        %214 = sbr.rel (%p212) target = $region44
      $region43: #{tabular_model_forward.3} parent=27 // pred_region
        _
      $region44: #{tabular_model_forward.3} parent=27 // pred_fallthru
        _
      // Predicated region
      $region45: #{tabular_model_forward.3} parent=27 // pred_check
        %p215 = pneg %p76
      $region46: #{tabular_model_forward.3} parent=27 // pred_check_branch
        %217 = sbr.rel (%p215) target = $region48
      $region47: #{tabular_model_forward.3} parent=27 // pred_region
        _
      $region48: #{tabular_model_forward.3} parent=27 // pred_fallthru
        _
      // Predicated region
      $region49: #{tabular_model_forward.3} parent=27 // pred_check
        %p218 = pneg %p97
      $region50: #{tabular_model_forward.3} parent=27 // pred_check_branch
        %220 = sbr.rel (%p218) target = $region52
      $region51: #{tabular_model_forward.3} parent=27 // pred_region
        _
      $region52: #{tabular_model_forward.3} parent=27 // pred_fallthru
        _
    $region28: #{tabular_model_forward.3} parent=5 // pred_fallthru
      _
    %p221 = scmp.le.s32.totalorder 2, %s11
    // Predicated region
    $region53: #{tabular_model_forward.3} parent=5 // pred_check
      %p222 = pneg %p221
    $region54: #{tabular_model_forward.3} parent=5 // pred_check_branch
      %224 = sbr.rel (%p222) target = $region56
    $region55: #{tabular_model_forward.3} parent=5 // pred_region
      %s225 = ssub.s32 %s11, 2
    $region56: #{tabular_model_forward.3} parent=5 // pred_fallthru
      _
  $region6: #{tabular_model_forward.3} parent=0 // loop_footer
    %s15 = sadd.s32 1, %s11
  $region7: #{tabular_model_forward.3} parent=0 // loop_footer_branch
    %10 = sbr.rel target = $region3
  $region8: #{tabular_model_forward.3} parent=0 // loop_exit
    _

// kernel: tabular_model_forward.4
$region0: #{tabular_model_forward.4}
  #allocation0 [shape = 'u32[]', space=smem, size = 0x4, offset = 0x4, fixed_abs, tag = 'smem constant byte address 0x4 - core index']
  #allocation1 [shape = 'u32[144,128]{1,0:T(1,128)}', space=vmem, size = 0x12000, scoped, tag = 'internal scratch']
  #allocation2 [shape = 's32[1]{0:T(128)S(6)}', space=smem, size = 0x200, scoped, tag = 'scoped memory for tabular_model_forward.4']
  %s0 = inlined_call_operand.<no memory space> [shape: s32[1], index: 0, kind: input, shape index: {}]
  %s1 = inlined_call_operand.vmem [shape: f32[24,128], index: 1, kind: input, shape index: {}]
  %s2 = inlined_call_operand.vmem [shape: f32[1,128], index: 2, kind: input, shape index: {}]
  %s3 = inlined_call_operand.vmem [shape: f32[1,128], index: 3, kind: input, shape index: {}]
  %s4 = inlined_call_operand.vmem [shape: f32[1,128], index: 4, kind: input, shape index: {}]
  %s5 = inlined_call_operand.vmem [shape: f32[1,128], index: 5, kind: input, shape index: {}]
  %s6 = inlined_call_operand.vmem [shape: bf16[128,256], index: 6, kind: input, shape index: {}]
  %s7 = inlined_call_operand.vmem [shape: f32[1,256], index: 7, kind: input, shape index: {}]
  %s8 = inlined_call_operand.vmem [shape: f32[24,128], index: 8, kind: output, shape index: {0}]
  %s9 = inlined_call_operand.vmem [shape: f32[1,128], index: 9, kind: output, shape index: {1}]
  %s10 = inlined_call_operand.vmem [shape: f32[1,128], index: 10, kind: output, shape index: {2}]
  %11 = xla_tuple %s8, %s9, %s10
  %s12 = sld [smem:[#allocation0]]
  $region89: #{tabular_model_forward.4} parent=0
    _
  %s14 = ssub.s32 1, %s12
  %s15 = scalar_select 0, %s14, %s12
  %16 = sst [smem:[#allocation2]] %s0
  loop: start=0, step=1, limit=5
  $region2: #{tabular_model_forward.4} parent=0 // loop_pre_header
    _
  $region3: #{tabular_model_forward.4} parent=0 // loop_header
    %s18 = sphi 0, %s22
    %p19 = scmp.ge.s32.totalorder %s18, 5
    %s26 = sphi 0, %s26
    %s28 = sphi 0, %s26
    %s29 = sphi 0, %s28
    %s43 = sphi 0, %s29
    %s49 = sphi 0, %s51
    %s52 = sphi 0, %s49
    %s53 = sphi 0, %s52
    %s69 = sphi 0, %s53
    %s73 = sphi 0, %s73
    %s75 = sphi 0, %s73
    %s76 = sphi 0, %s75
    %s90 = sphi 0, %s76
    %s94 = sphi 0, %s94
    %s96 = sphi 0, %s94
    %s97 = sphi 0, %s96
    %s111 = sphi 0, %s97
    %s115 = sphi 0, %s115
    %s117 = sphi 0, %s115
    %s118 = sphi 0, %s117
    %s132 = sphi 0, %s118
    %s136 = sphi 0, %s136
    %s138 = sphi 0, %s136
    %s139 = sphi 0, %s138
    %s153 = sphi 0, %s139
    %s157 = sphi 0, %s157
    %s159 = sphi 0, %s157
    %s160 = sphi 0, %s159
    %s174 = sphi 0, %s160
    %s178 = sphi 0, %s178
    %s180 = sphi 0, %s178
    %s181 = sphi 0, %s180
    %s195 = sphi 0, %s181
    %s201 = sphi 0, %s203
    %s204 = sphi 0, %s201
    %s205 = sphi 0, %s204
    %s221 = sphi 0, %s205
    %s225 = sphi 0, %s225
    %s227 = sphi 0, %s225
    %s228 = sphi 0, %s227
    %s242 = sphi 0, %s228
    %s246 = sphi 0, %s246
    %s248 = sphi 0, %s246
    %s249 = sphi 0, %s248
    %s263 = sphi 0, %s249
  $region4: #{tabular_model_forward.4} parent=0 // loop_header_branch
    %21 = sbr.rel (%p19) target = $region8
  $region5: #{tabular_model_forward.4} parent=0 // loop_body
    %s23 = ssub.s32 %s18, 1
    %s24 = ssub.s32 %s18, 2
    %s25 = sadd.s32 %s18, 1
    %s27 = sadd.s32 %s26, 1
    %p30 = scmp.eq.s32.totalorder %s18, 2
    %p31 = scmp.ne.s32.totalorder %s26, %s28
    %p32 = scmp.eq.s32.totalorder %s18, 0
    %p33 = por %p31, %p32
    %p34 = scmp.ne.s32.totalorder %s26, %s28
    %p35 = scmp.eq.s32.totalorder %s23, 2
    %p36 = por %p34, %p35
    %p37 = scmp.ne.s32.totalorder %s28, %s29
    %p38 = scmp.eq.s32.totalorder %s23, 0
    %p39 = por %p37, %p38
    %p40 = scmp.ne.s32.totalorder %s28, %s29
    %p41 = scmp.eq.s32.totalorder %s24, 2
    %p42 = por %p40, %p41
    %p44 = scmp.ne.s32.totalorder %s29, %s43
    %p45 = scmp.eq.s32.totalorder %s24, 0
    %p46 = por %p44, %p45
    %s47 = ssub.s32 %s18, %s25
    %p48 = scmp.eq.s32.totalorder %s47, 0
    %s50 = sadd.s32 %s49, 1
    %s51 = scalar_select %p48, %s49, %s50
    %p54 = pneg %p48
    %p55 = scmp.eq.s32.totalorder %s18, 2
    %p56 = por %p54, %p55
    %p57 = scmp.ne.s32.totalorder %s49, %s52
    %p58 = scmp.eq.s32.totalorder %s18, 0
    %p59 = por %p57, %p58
    %p60 = scmp.ne.s32.totalorder %s49, %s52
    %p61 = scmp.eq.s32.totalorder %s23, 2
    %p62 = por %p60, %p61
    %p63 = scmp.ne.s32.totalorder %s52, %s53
    %p64 = scmp.eq.s32.totalorder %s23, 0
    %p65 = por %p63, %p64
    %p66 = scmp.ne.s32.totalorder %s52, %s53
    %p67 = scmp.eq.s32.totalorder %s24, 2
    %p68 = por %p66, %p67
    %p70 = scmp.ne.s32.totalorder %s53, %s69
    %p71 = scmp.eq.s32.totalorder %s24, 0
    %p72 = por %p70, %p71
    %s74 = sadd.s32 %s73, 1
    %p77 = scmp.eq.s32.totalorder %s18, 2
    %p78 = scmp.ne.s32.totalorder %s73, %s75
    %p79 = scmp.eq.s32.totalorder %s18, 0
    %p80 = por %p78, %p79
    %p81 = scmp.ne.s32.totalorder %s73, %s75
    %p82 = scmp.eq.s32.totalorder %s23, 2
    %p83 = por %p81, %p82
    %p84 = scmp.ne.s32.totalorder %s75, %s76
    %p85 = scmp.eq.s32.totalorder %s23, 0
    %p86 = por %p84, %p85
    %p87 = scmp.ne.s32.totalorder %s75, %s76
    %p88 = scmp.eq.s32.totalorder %s24, 2
    %p89 = por %p87, %p88
    %p91 = scmp.ne.s32.totalorder %s76, %s90
    %p92 = scmp.eq.s32.totalorder %s24, 0
    %p93 = por %p91, %p92
    %s95 = sadd.s32 %s94, 1
    %p98 = scmp.eq.s32.totalorder %s18, 2
    %p99 = scmp.ne.s32.totalorder %s94, %s96
    %p100 = scmp.eq.s32.totalorder %s18, 0
    %p101 = por %p99, %p100
    %p102 = scmp.ne.s32.totalorder %s94, %s96
    %p103 = scmp.eq.s32.totalorder %s23, 2
    %p104 = por %p102, %p103
    %p105 = scmp.ne.s32.totalorder %s96, %s97
    %p106 = scmp.eq.s32.totalorder %s23, 0
    %p107 = por %p105, %p106
    %p108 = scmp.ne.s32.totalorder %s96, %s97
    %p109 = scmp.eq.s32.totalorder %s24, 2
    %p110 = por %p108, %p109
    %p112 = scmp.ne.s32.totalorder %s97, %s111
    %p113 = scmp.eq.s32.totalorder %s24, 0
    %p114 = por %p112, %p113
    %s116 = sadd.s32 %s115, 1
    %p119 = scmp.eq.s32.totalorder %s18, 2
    %p120 = scmp.ne.s32.totalorder %s115, %s117
    %p121 = scmp.eq.s32.totalorder %s18, 0
    %p122 = por %p120, %p121
    %p123 = scmp.ne.s32.totalorder %s115, %s117
    %p124 = scmp.eq.s32.totalorder %s23, 2
    %p125 = por %p123, %p124
    %p126 = scmp.ne.s32.totalorder %s117, %s118
    %p127 = scmp.eq.s32.totalorder %s23, 0
    %p128 = por %p126, %p127
    %p129 = scmp.ne.s32.totalorder %s117, %s118
    %p130 = scmp.eq.s32.totalorder %s24, 2
    %p131 = por %p129, %p130
    %p133 = scmp.ne.s32.totalorder %s118, %s132
    %p134 = scmp.eq.s32.totalorder %s24, 0
    %p135 = por %p133, %p134
    %s137 = sadd.s32 %s136, 1
    %p140 = scmp.eq.s32.totalorder %s18, 2
    %p141 = scmp.ne.s32.totalorder %s136, %s138
    %p142 = scmp.eq.s32.totalorder %s18, 0
    %p143 = por %p141, %p142
    %p144 = scmp.ne.s32.totalorder %s136, %s138
    %p145 = scmp.eq.s32.totalorder %s23, 2
    %p146 = por %p144, %p145
    %p147 = scmp.ne.s32.totalorder %s138, %s139
    %p148 = scmp.eq.s32.totalorder %s23, 0
    %p149 = por %p147, %p148
    %p150 = scmp.ne.s32.totalorder %s138, %s139
    %p151 = scmp.eq.s32.totalorder %s24, 2
    %p152 = por %p150, %p151
    %p154 = scmp.ne.s32.totalorder %s139, %s153
    %p155 = scmp.eq.s32.totalorder %s24, 0
    %p156 = por %p154, %p155
    %s158 = sadd.s32 %s157, 1
    %p161 = scmp.eq.s32.totalorder %s18, 2
    %p162 = scmp.ne.s32.totalorder %s157, %s159
    %p163 = scmp.eq.s32.totalorder %s18, 0
    %p164 = por %p162, %p163
    %p165 = scmp.ne.s32.totalorder %s157, %s159
    %p166 = scmp.eq.s32.totalorder %s23, 2
    %p167 = por %p165, %p166
    %p168 = scmp.ne.s32.totalorder %s159, %s160
    %p169 = scmp.eq.s32.totalorder %s23, 0
    %p170 = por %p168, %p169
    %p171 = scmp.ne.s32.totalorder %s159, %s160
    %p172 = scmp.eq.s32.totalorder %s24, 2
    %p173 = por %p171, %p172
    %p175 = scmp.ne.s32.totalorder %s160, %s174
    %p176 = scmp.eq.s32.totalorder %s24, 0
    %p177 = por %p175, %p176
    %s179 = sadd.s32 %s178, 1
    %p182 = scmp.eq.s32.totalorder %s18, 2
    %p183 = scmp.ne.s32.totalorder %s178, %s180
    %p184 = scmp.eq.s32.totalorder %s18, 0
    %p185 = por %p183, %p184
    %p186 = scmp.ne.s32.totalorder %s178, %s180
    %p187 = scmp.eq.s32.totalorder %s23, 2
    %p188 = por %p186, %p187
    %p189 = scmp.ne.s32.totalorder %s180, %s181
    %p190 = scmp.eq.s32.totalorder %s23, 0
    %p191 = por %p189, %p190
    %p192 = scmp.ne.s32.totalorder %s180, %s181
    %p193 = scmp.eq.s32.totalorder %s24, 2
    %p194 = por %p192, %p193
    %p196 = scmp.ne.s32.totalorder %s181, %s195
    %p197 = scmp.eq.s32.totalorder %s24, 0
    %p198 = por %p196, %p197
    %s199 = ssub.s32 %s18, %s25
    %p200 = scmp.eq.s32.totalorder %s199, 0
    %s202 = sadd.s32 %s201, 1
    %s203 = scalar_select %p200, %s201, %s202
    %p206 = pneg %p200
    %p207 = scmp.eq.s32.totalorder %s18, 2
    %p208 = por %p206, %p207
    %p209 = scmp.ne.s32.totalorder %s201, %s204
    %p210 = scmp.eq.s32.totalorder %s18, 0
    %p211 = por %p209, %p210
    %p212 = scmp.ne.s32.totalorder %s201, %s204
    %p213 = scmp.eq.s32.totalorder %s23, 2
    %p214 = por %p212, %p213
    %p215 = scmp.ne.s32.totalorder %s204, %s205
    %p216 = scmp.eq.s32.totalorder %s23, 0
    %p217 = por %p215, %p216
    %p218 = scmp.ne.s32.totalorder %s204, %s205
    %p219 = scmp.eq.s32.totalorder %s24, 2
    %p220 = por %p218, %p219
    %p222 = scmp.ne.s32.totalorder %s205, %s221
    %p223 = scmp.eq.s32.totalorder %s24, 0
    %p224 = por %p222, %p223
    %s226 = sadd.s32 %s225, 1
    %p229 = scmp.eq.s32.totalorder %s18, 2
    %p230 = scmp.ne.s32.totalorder %s225, %s227
    %p231 = scmp.eq.s32.totalorder %s18, 0
    %p232 = por %p230, %p231
    %p233 = scmp.ne.s32.totalorder %s225, %s227
    %p234 = scmp.eq.s32.totalorder %s23, 2
    %p235 = por %p233, %p234
    %p236 = scmp.ne.s32.totalorder %s227, %s228
    %p237 = scmp.eq.s32.totalorder %s23, 0
    %p238 = por %p236, %p237
    %p239 = scmp.ne.s32.totalorder %s227, %s228
    %p240 = scmp.eq.s32.totalorder %s24, 2
    %p241 = por %p239, %p240
    %p243 = scmp.ne.s32.totalorder %s228, %s242
    %p244 = scmp.eq.s32.totalorder %s24, 0
    %p245 = por %p243, %p244
    %s247 = sadd.s32 %s246, 1
    %p250 = scmp.eq.s32.totalorder %s18, 2
    %p251 = scmp.ne.s32.totalorder %s246, %s248
    %p252 = scmp.eq.s32.totalorder %s18, 0
    %p253 = por %p251, %p252
    %p254 = scmp.ne.s32.totalorder %s246, %s248
    %p255 = scmp.eq.s32.totalorder %s23, 2
    %p256 = por %p254, %p255
    %p257 = scmp.ne.s32.totalorder %s248, %s249
    %p258 = scmp.eq.s32.totalorder %s23, 0
    %p259 = por %p257, %p258
    %p260 = scmp.ne.s32.totalorder %s248, %s249
    %p261 = scmp.eq.s32.totalorder %s24, 2
    %p262 = por %p260, %p261
    %p264 = scmp.ne.s32.totalorder %s249, %s263
    %p265 = scmp.eq.s32.totalorder %s24, 0
    %p266 = por %p264, %p265
    %p267 = scmp.le.s32.totalorder 1, %s18
    %p268 = scmp.lt.s32.totalorder %s18, 4
    %p269 = pnand %p267, %p268
    %p270 = pneg %p269
    // Predicated region
    $region9: #{tabular_model_forward.4} parent=5 // pred_check
      _
    $region10: #{tabular_model_forward.4} parent=5 // pred_check_branch
      %272 = sbr.rel (%p269) target = $region12
    $region11: #{tabular_model_forward.4} parent=5 // pred_region
      %s273 = ssub.s32 %s18, 1
      // Predicated region
      $region13: #{tabular_model_forward.4} parent=11 // pred_check
        %p274 = pneg %p39
      $region14: #{tabular_model_forward.4} parent=11 // pred_check_branch
        %276 = sbr.rel (%p274) target = $region16
      $region15: #{tabular_model_forward.4} parent=11 // pred_region
        _
      $region16: #{tabular_model_forward.4} parent=11 // pred_fallthru
        _
      // Predicated region
      $region17: #{tabular_model_forward.4} parent=11 // pred_check
        %p277 = pneg %p86
      $region18: #{tabular_model_forward.4} parent=11 // pred_check_branch
        %279 = sbr.rel (%p277) target = $region20
      $region19: #{tabular_model_forward.4} parent=11 // pred_region
        _
      $region20: #{tabular_model_forward.4} parent=11 // pred_fallthru
        _
      // Predicated region
      $region21: #{tabular_model_forward.4} parent=11 // pred_check
        %p280 = pneg %p107
      $region22: #{tabular_model_forward.4} parent=11 // pred_check_branch
        %282 = sbr.rel (%p280) target = $region24
      $region23: #{tabular_model_forward.4} parent=11 // pred_region
        _
      $region24: #{tabular_model_forward.4} parent=11 // pred_fallthru
        _
      // Predicated region
      $region25: #{tabular_model_forward.4} parent=11 // pred_check
        %p283 = pneg %p128
      $region26: #{tabular_model_forward.4} parent=11 // pred_check_branch
        %285 = sbr.rel (%p283) target = $region28
      $region27: #{tabular_model_forward.4} parent=11 // pred_region
        _
      $region28: #{tabular_model_forward.4} parent=11 // pred_fallthru
        _
      // Predicated region
      $region29: #{tabular_model_forward.4} parent=11 // pred_check
        %p286 = pneg %p149
      $region30: #{tabular_model_forward.4} parent=11 // pred_check_branch
        %288 = sbr.rel (%p286) target = $region32
      $region31: #{tabular_model_forward.4} parent=11 // pred_region
        _
      $region32: #{tabular_model_forward.4} parent=11 // pred_fallthru
        _
      // Predicated region
      $region33: #{tabular_model_forward.4} parent=11 // pred_check
        %p289 = pneg %p170
      $region34: #{tabular_model_forward.4} parent=11 // pred_check_branch
        %291 = sbr.rel (%p289) target = $region36
      $region35: #{tabular_model_forward.4} parent=11 // pred_region
        _
      $region36: #{tabular_model_forward.4} parent=11 // pred_fallthru
        _
      // Predicated region
      $region37: #{tabular_model_forward.4} parent=11 // pred_check
        %p292 = pneg %p191
      $region38: #{tabular_model_forward.4} parent=11 // pred_check_branch
        %294 = sbr.rel (%p292) target = $region40
      $region39: #{tabular_model_forward.4} parent=11 // pred_region
        _
      $region40: #{tabular_model_forward.4} parent=11 // pred_fallthru
        _
    $region12: #{tabular_model_forward.4} parent=5 // pred_fallthru
      _
    %p295 = scmp.lt.s32.totalorder %s18, 3
    // Predicated region
    $region41: #{tabular_model_forward.4} parent=5 // pred_check
      %p296 = pneg %p295
    $region42: #{tabular_model_forward.4} parent=5 // pred_check_branch
      %298 = sbr.rel (%p296) target = $region44
    $region43: #{tabular_model_forward.4} parent=5 // pred_region
      // Predicated region
      $region45: #{tabular_model_forward.4} parent=43 // pred_check
        %p299 = pneg %p59
      $region46: #{tabular_model_forward.4} parent=43 // pred_check_branch
        %301 = sbr.rel (%p299) target = $region48
      $region47: #{tabular_model_forward.4} parent=43 // pred_region
        %p302 = scmp.lt.s32.totalorder %s18, 2
        %s303 = scalar_select %p302, %s18, 2
        %s304 = smul.addr %s303, 8
        %s305 = scalar_lea.vmem %s1, %s304
      $region48: #{tabular_model_forward.4} parent=43 // pred_fallthru
        _
    $region44: #{tabular_model_forward.4} parent=5 // pred_fallthru
      _
    %p306 = scmp.le.s32.totalorder 1, %s18
    %p307 = scmp.lt.s32.totalorder %s18, 4
    %p308 = pnand %p306, %p307
    %p309 = pneg %p308
    // Predicated region
    $region49: #{tabular_model_forward.4} parent=5 // pred_check
      _
    $region50: #{tabular_model_forward.4} parent=5 // pred_check_branch
      %311 = sbr.rel (%p308) target = $region52
    $region51: #{tabular_model_forward.4} parent=5 // pred_region
      %s312 = ssub.s32 %s18, 1
      %p313 = pneg %p39
      %p314 = pneg %p36
      %p315 = scmp.lt.s32.totalorder %s23, 2
      %s316 = scalar_select %p315, %s23, 2
      %s317 = smul.addr %s316, 8
      %s318 = scalar_lea.vmem %s1, %s317
      %p319 = pneg %p65
      %p320 = pneg %p62
      %p321 = pneg %p86
      %p322 = pneg %p83
      %p323 = pneg %p107
      %p324 = pneg %p104
      %p325 = pneg %p128
      %p326 = pneg %p125
      %p327 = pneg %p149
      %p328 = pneg %p146
      %p329 = pneg %p170
      %p330 = pneg %p167
      %p331 = pneg %p191
      %p332 = pneg %p188
      %p333 = pneg %p217
      %p334 = pneg %p214
      %p335 = scmp.lt.s32.totalorder %s23, 2
      %s336 = scalar_select %p335, %s23, 2
      %s337 = smul.addr %s336, 8
      %s338 = scalar_lea.vmem %s8, %s337
      %p339 = pneg %p238
      %p340 = pneg %p235
      %p341 = pneg %p259
      %p342 = pneg %p256
      %p343 = scmp.lt.s32.totalorder %s23, 2
      %s344 = scalar_select %p343, %s23, 2
      %s345 = smul.addr %s344, 8
      %s346 = scalar_lea.vmem %s1, %s345
      %p347 = scmp.lt.s32.totalorder %s23, 2
      %s348 = scalar_select %p347, %s23, 2
      %s349 = smul.addr %s348, 8
      %s350 = scalar_lea.vmem %s8, %s349
      %p352 = scmp.eq.s32.totalorder %s23, 0
      // Predicated region
      $region53: #{tabular_model_forward.4} parent=51 // pred_check
        %p353 = pneg %p352
      $region54: #{tabular_model_forward.4} parent=51 // pred_check_branch
        %355 = sbr.rel (%p353) target = $region56
      $region55: #{tabular_model_forward.4} parent=51 // pred_region
        %356 = vst [vmem:[%s9] sm:$0x1] 0.0
        %357 = vst [vmem:[%s10] sm:$0x1] 0.0
      $region56: #{tabular_model_forward.4} parent=51 // pred_fallthru
        _
      %v358 = vld [vmem:[%s346] sm:$0xff]
      %v359 = vld [vmem:[%s2] sm:$0x1]
      %v361 = vlaneseq
      %v362 = vshrl.u32 %v361, 7
      %v363 = vsub.s32 0, %v362
      %v364 = vrot.slane %v359, %v363
      %v366 = vsub.f32 %v358, %v364
      %v367 = vld [vmem:[%s3] sm:$0x1]
      %v369 = vlaneseq
      %v370 = vshrl.u32 %v369, 7
      %v371 = vsub.s32 0, %v370
      %v372 = vrot.slane %v367, %v371
      %v374 = vmul.f32 %v366, %v372
      %v375 = vld [vmem:[%s4] sm:$0x1]
      %v377 = vlaneseq
      %v378 = vshrl.u32 %v377, 7
      %v379 = vsub.s32 0, %v378
      %v380 = vrot.slane %v375, %v379
      %v382 = vmul.f32 %v374, %v380
      %v383 = vld [vmem:[%s5] sm:$0x1]
      %v385 = vlaneseq
      %v386 = vshrl.u32 %v385, 7
      %v387 = vsub.s32 0, %v386
      %v388 = vrot.slane %v383, %v387
      %v390 = vadd.f32 %v382, %v388
      %v391 = vpack.c.bf16 %v390, %v390
      %v392 = vld [vmem:[%s6] sm:$0xff]
      %v393 = vld [vmem:[%s6 + $0x8] sm:$0xff]
      %v394 = vld [vmem:[%s6 + $0x10] sm:$0xff]
      %v395 = vld [vmem:[%s6 + $0x18] sm:$0xff]
      %v396 = vld [vmem:[%s6 + $0x20] sm:$0xff]
      %v397 = vld [vmem:[%s6 + $0x28] sm:$0xff]
      %v398 = vld [vmem:[%s6 + $0x30] sm:$0xff]
      %v399 = vld [vmem:[%s6 + $0x38] sm:$0xff]
      %v400 = vld [vmem:[%s6 + $0x40] sm:$0xff]
      %v401 = vld [vmem:[%s6 + $0x48] sm:$0xff]
      %v402 = vld [vmem:[%s6 + $0x50] sm:$0xff]
      %v403 = vld [vmem:[%s6 + $0x58] sm:$0xff]
      %v404 = vld [vmem:[%s6 + $0x60] sm:$0xff]
      %v405 = vld [vmem:[%s6 + $0x68] sm:$0xff]
      %v406 = vld [vmem:[%s6 + $0x70] sm:$0xff]
      %v407 = vld [vmem:[%s6 + $0x78] sm:$0xff]
      %v408 = vld [vmem:[%s7] sm:$0x3]
      %v410 = vlaneseq
      %v411 = vshrl.u32 %v410, 7
      %v412 = vsub.s32 0, %v411
      %v413 = vrot.slane %v408, %v412
      %v414 = vlaneseq
      %v415 = vshrl.u32 %v414, 7
      %v416 = vsub.s32 1, %v415
      %v417 = vrot.slane %v408, %v416
      %v436 = vunpack.c.l.b16 %v392
      %v437 = vunpack.c.h.b16 %v392
      %v438 = vunpack.c.l.b16 %v393
      %v439 = vunpack.c.h.b16 %v393
      %v440 = vunpack.c.l.b16 %v394
      %v441 = vunpack.c.h.b16 %v394
      %v442 = vunpack.c.l.b16 %v395
      %v443 = vunpack.c.h.b16 %v395
      %v444 = vunpack.c.l.b16 %v396
      %v445 = vunpack.c.h.b16 %v396
      %v446 = vunpack.c.l.b16 %v397
      %v447 = vunpack.c.h.b16 %v397
      %v448 = vunpack.c.l.b16 %v398
      %v449 = vunpack.c.h.b16 %v398
      %v450 = vunpack.c.l.b16 %v399
      %v451 = vunpack.c.h.b16 %v399
      %v452 = vunpack.c.l.b16 %v400
      %v453 = vunpack.c.h.b16 %v400
      %v454 = vunpack.c.l.b16 %v401
      %v455 = vunpack.c.h.b16 %v401
      %v456 = vunpack.c.l.b16 %v402
      %v457 = vunpack.c.h.b16 %v402
      %v458 = vunpack.c.l.b16 %v403
      %v459 = vunpack.c.h.b16 %v403
      %v460 = vunpack.c.l.b16 %v404
      %v461 = vunpack.c.h.b16 %v404
      %v462 = vunpack.c.l.b16 %v405
      %v463 = vunpack.c.h.b16 %v405
      %v464 = vunpack.c.l.b16 %v406
      %v465 = vunpack.c.h.b16 %v406
      %v466 = vunpack.c.l.b16 %v407
      %v467 = vunpack.c.h.b16 %v407
      %v468 = vpack.c.b16 %v438, %v436
      %v469 = vpack.c.b16 %v439, %v437
      %v470 = vpack.c.b16 %v442, %v440
      %v471 = vpack.c.b16 %v443, %v441
      %v472 = vpack.c.b16 %v446, %v444
      %v473 = vpack.c.b16 %v447, %v445
      %v474 = vpack.c.b16 %v450, %v448
      %v475 = vpack.c.b16 %v451, %v449
      %v476 = vpack.c.b16 %v454, %v452
      %v477 = vpack.c.b16 %v455, %v453
      %v478 = vpack.c.b16 %v458, %v456
      %v479 = vpack.c.b16 %v459, %v457
      %v480 = vpack.c.b16 %v462, %v460
      %v481 = vpack.c.b16 %v463, %v461
      %v482 = vpack.c.b16 %v466, %v464
      %v483 = vpack.c.b16 %v467, %v465
      %500 = vmatprep.subr.bf16.mxu0 %v483
      %501 = vmatpush1.bf16.msra.mxu0 %v482
      %502 = vmatprep.subr.bf16.mxu0 %v481
      %503 = vmatpush1.bf16.msra.mxu0 %v480
      %504 = vmatprep.subr.bf16.mxu0 %v479
      %505 = vmatpush1.bf16.msra.mxu0 %v478
      %506 = vmatprep.subr.bf16.mxu0 %v477
      %507 = vmatpush1.bf16.msra.mxu0 %v476
      %508 = vmatprep.subr.bf16.mxu0 %v475
      %509 = vmatpush1.bf16.msra.mxu0 %v474
      %510 = vmatprep.subr.bf16.mxu0 %v473
      %511 = vmatpush1.bf16.msra.mxu0 %v472
      %512 = vmatprep.subr.bf16.mxu0 %v471
      %513 = vmatpush1.bf16.msra.mxu0 %v470
      %514 = vmatprep.subr.bf16.mxu0 %v469
      %515 = vmatpush1.bf16.msra.mxu0 %v468
      %516 = vmatprep.subr.bf16.mxu0 0
      %517 = vmatpush2.bf16.msra.mxu0 0
      %518 = vmatprep.subr.bf16.mxu0 0
      %519 = vmatpush2.bf16.msra.mxu0 0
      %520 = vmatprep.subr.bf16.mxu0 0
      %521 = vmatpush2.bf16.msra.mxu0 0
      %522 = vmatprep.subr.bf16.mxu0 0
      %523 = vmatpush2.bf16.msra.mxu0 0
      %524 = vmatprep.subr.bf16.mxu0 0
      %525 = vmatpush2.bf16.msra.mxu0 0
      %526 = vmatprep.subr.bf16.mxu0 0
      %527 = vmatpush2.bf16.msra.mxu0 0
      %528 = vmatprep.subr.bf16.mxu0 0
      %529 = vmatpush2.bf16.msra.mxu0 0
      %530 = vmatprep.subr.bf16.mxu0 0
      %531 = vmatpush2.bf16.msra.mxu0 0
      %532 = vmatprep.mubr.bf16.mxu0 0
      %533 = vmatmul.mubr.bf16.gmra.mxu0 %v391
      %v534 = vpop.f32.mrf.mxu0
      %v535 = vadd.f32 %v413, %v534
      %v536 = vpop.f32.mrf.mxu0
      %v537 = vadd.f32 %v417, %v536
      %v538 = vpop.f32.mrf.mxu0
      %v539 = vpop.f32.mrf.mxu0
      %540 = vdwg.mxu0
      %v541 = vxor.u32 %v535, 2147483648
      %v542 = vmul.f32 %v541, 1.442695
      %v543 = vpow.pop %v542
      %v544 = vadd.f32 %v543, 1.0
      %v545 = vrcp.pop %v544
      %v546 = vmul.f32 1.0, %v545
      %v547 = vmul.f32 %v535, %v546
      %v548 = vmul.f32 %v547, %v537
      %549 = vst [vmem:[%s350] sm:$0xff] %v548
      %s550 = sld [smem:[#allocation2]]
      %s551 = smul.u32 %s23, 8
      %v552 = vlaneseq
      %v553 = vshrl.u32 %v552, 7
      %v554 = vstv %s551
      %v555 = vadd.s32 %v554, %v553
      %v556 = vstv %s550
      %vm557 = vcmp.lt.s32.totalorder %v555, %v556
      %v558 = vsel %vm557, 1, 0
      %v559 = vcvt.s32.f32 %v558
      %v560 = vmul.f32 %v548, %v559
      %v561 = vld [vmem:[%s9] sm:$0x1]
      %v562 = vrot.slane %v560, 4
      %v563 = vadd.f32 %v560, %v562
      %v564 = vrot.slane %v563, 2
      %v565 = vadd.f32 %v563, %v564
      %v566 = vrot.slane %v565, 1
      %v567 = vadd.f32 %v565, %v566
      %v568 = vadd.f32 %v561, %v567
      %569 = vst [vmem:[%s9] sm:$0x1] %v568
      %v570 = vld [vmem:[%s10] sm:$0x1]
      %v571 = vmul.f32 %v560, %v560
      %v572 = vrot.slane %v571, 4
      %v573 = vadd.f32 %v571, %v572
      %v574 = vrot.slane %v573, 2
      %v575 = vadd.f32 %v573, %v574
      %v576 = vrot.slane %v575, 1
      %v577 = vadd.f32 %v575, %v576
      %v578 = vadd.f32 %v570, %v577
      %579 = vst [vmem:[%s10] sm:$0x1] %v578
      %p580 = scmp.eq.s32.totalorder %s23, 2
      // Predicated region
      $region57: #{tabular_model_forward.4} parent=51 // pred_check
        %p581 = pneg %p580
      $region58: #{tabular_model_forward.4} parent=51 // pred_check_branch
        %583 = sbr.rel (%p581) target = $region60
      $region59: #{tabular_model_forward.4} parent=51 // pred_region
        %s584 = scvt.s32.f32 %s550
        %v585 = vstv %s584
        %v586 = vrcp.pop %v585
        %s587 = vtos %v586
        %v588 = vld [vmem:[%s9] sm:$0x1]
        %v589 = vstv %s587
        %v590 = vmul.f32 %v588, %v589
        %v591 = vld [vmem:[%s10] sm:$0x1]
        %v592 = vmul.f32 %v591, %v589
        %v593 = vmul.f32 %v590, %v590
        %v594 = vsub.f32 %v592, %v593
        %v595 = vmax.f32 %v594, 0.0
        %596 = vst [vmem:[%s9] sm:$0x1] %v590
        %v597 = vadd.f32 %v595, 1e-05
        %v598 = vrsqrt.pop %v597
        %599 = vst [vmem:[%s10] sm:$0x1] %v598
      $region60: #{tabular_model_forward.4} parent=51 // pred_fallthru
        _
      %p600 = scmp.lt.s32.totalorder %s23, 2
      %s601 = scalar_select %p600, %s23, 2
      %s602 = smul.addr %s601, 8
      %s603 = scalar_lea.vmem %s8, %s602
      // Predicated region
      $region61: #{tabular_model_forward.4} parent=51 // pred_check
        %p604 = pneg %p214
      $region62: #{tabular_model_forward.4} parent=51 // pred_check_branch
        %606 = sbr.rel (%p604) target = $region64
      $region63: #{tabular_model_forward.4} parent=51 // pred_region
        _
      $region64: #{tabular_model_forward.4} parent=51 // pred_fallthru
        _
      // Predicated region
      $region65: #{tabular_model_forward.4} parent=51 // pred_check
        %p607 = pneg %p235
      $region66: #{tabular_model_forward.4} parent=51 // pred_check_branch
        %609 = sbr.rel (%p607) target = $region68
      $region67: #{tabular_model_forward.4} parent=51 // pred_region
        _
      $region68: #{tabular_model_forward.4} parent=51 // pred_fallthru
        _
      // Predicated region
      $region69: #{tabular_model_forward.4} parent=51 // pred_check
        %p610 = pneg %p256
      $region70: #{tabular_model_forward.4} parent=51 // pred_check_branch
        %612 = sbr.rel (%p610) target = $region72
      $region71: #{tabular_model_forward.4} parent=51 // pred_region
        _
      $region72: #{tabular_model_forward.4} parent=51 // pred_fallthru
        _
      // Predicated region
      $region73: #{tabular_model_forward.4} parent=51 // pred_check
        %p613 = pneg %p235
      $region74: #{tabular_model_forward.4} parent=51 // pred_check_branch
        %615 = sbr.rel (%p613) target = $region76
      $region75: #{tabular_model_forward.4} parent=51 // pred_region
        _
      $region76: #{tabular_model_forward.4} parent=51 // pred_fallthru
        _
      // Predicated region
      $region77: #{tabular_model_forward.4} parent=51 // pred_check
        %p616 = pneg %p256
      $region78: #{tabular_model_forward.4} parent=51 // pred_check_branch
        %618 = sbr.rel (%p616) target = $region80
      $region79: #{tabular_model_forward.4} parent=51 // pred_region
        _
      $region80: #{tabular_model_forward.4} parent=51 // pred_fallthru
        _
    $region52: #{tabular_model_forward.4} parent=5 // pred_fallthru
      _
    %p619 = scmp.le.s32.totalorder 2, %s18
    // Predicated region
    $region81: #{tabular_model_forward.4} parent=5 // pred_check
      %p620 = pneg %p619
    $region82: #{tabular_model_forward.4} parent=5 // pred_check_branch
      %622 = sbr.rel (%p620) target = $region84
    $region83: #{tabular_model_forward.4} parent=5 // pred_region
      %s623 = ssub.s32 %s18, 2
      // Predicated region
      $region85: #{tabular_model_forward.4} parent=83 // pred_check
        %p624 = pneg %p220
      $region86: #{tabular_model_forward.4} parent=83 // pred_check_branch
        %626 = sbr.rel (%p624) target = $region88
      $region87: #{tabular_model_forward.4} parent=83 // pred_region
        %p627 = scmp.lt.s32.totalorder %s24, 2
        %s628 = scalar_select %p627, %s24, 2
        %s629 = smul.addr %s628, 8
        %s630 = scalar_lea.vmem %s8, %s629
      $region88: #{tabular_model_forward.4} parent=83 // pred_fallthru
        _
    $region84: #{tabular_model_forward.4} parent=5 // pred_fallthru
      _
  $region6: #{tabular_model_forward.4} parent=0 // loop_footer
    %s22 = sadd.s32 1, %s18
  $region7: #{tabular_model_forward.4} parent=0 // loop_footer_branch
    %17 = sbr.rel target = $region3
  $region8: #{tabular_model_forward.4} parent=0 // loop_exit
    _

// kernel: tabular_model_forward.5
$region0: #{tabular_model_forward.5}
  #allocation0 [shape = 'u32[]', space=smem, size = 0x4, offset = 0x4, fixed_abs, tag = 'smem constant byte address 0x4 - core index']
  #allocation1 [shape = 'u32[144,128]{1,0:T(1,128)}', space=vmem, size = 0x12000, scoped, tag = 'internal scratch']
  %s0 = inlined_call_operand.vmem [shape: f32[24,128], index: 0, kind: input, shape index: {}]
  %s1 = inlined_call_operand.vmem [shape: f32[1,128], index: 1, kind: input, shape index: {}]
  %s2 = inlined_call_operand.vmem [shape: f32[1,128], index: 2, kind: input, shape index: {}]
  %s3 = inlined_call_operand.vmem [shape: f32[1,128], index: 3, kind: input, shape index: {}]
  %s4 = inlined_call_operand.vmem [shape: f32[1,128], index: 4, kind: input, shape index: {}]
  %s5 = inlined_call_operand.vmem [shape: bf16[128,256], index: 5, kind: input, shape index: {}]
  %s6 = inlined_call_operand.vmem [shape: f32[1,256], index: 6, kind: input, shape index: {}]
  %s7 = inlined_call_operand.vmem [shape: bf16[128,128], index: 7, kind: input, shape index: {}]
  %s8 = inlined_call_operand.vmem [shape: f32[1,128], index: 8, kind: input, shape index: {}]
  %s9 = inlined_call_operand.vmem [shape: f32[24,128], index: 9, kind: output, shape index: {}]
  %s10 = sld [smem:[#allocation0]]
  $region69: #{tabular_model_forward.5} parent=0
    _
  %s12 = ssub.s32 1, %s10
  %s13 = scalar_select 0, %s12, %s10
  loop: start=0, step=1, limit=5
  $region2: #{tabular_model_forward.5} parent=0 // loop_pre_header
    _
  $region3: #{tabular_model_forward.5} parent=0 // loop_header
    %s15 = sphi 0, %s19
    %p16 = scmp.ge.s32.totalorder %s15, 5
    %s25 = sphi 0, %s27
    %s28 = sphi 0, %s25
    %s29 = sphi 0, %s28
    %s45 = sphi 0, %s29
    %s49 = sphi 0, %s49
    %s51 = sphi 0, %s49
    %s52 = sphi 0, %s51
    %s66 = sphi 0, %s52
    %s70 = sphi 0, %s70
    %s72 = sphi 0, %s70
    %s73 = sphi 0, %s72
    %s87 = sphi 0, %s73
    %s91 = sphi 0, %s91
    %s93 = sphi 0, %s91
    %s94 = sphi 0, %s93
    %s108 = sphi 0, %s94
    %s112 = sphi 0, %s112
    %s114 = sphi 0, %s112
    %s115 = sphi 0, %s114
    %s129 = sphi 0, %s115
    %s133 = sphi 0, %s133
    %s135 = sphi 0, %s133
    %s136 = sphi 0, %s135
    %s150 = sphi 0, %s136
    %s154 = sphi 0, %s154
    %s156 = sphi 0, %s154
    %s157 = sphi 0, %s156
    %s171 = sphi 0, %s157
    %s175 = sphi 0, %s175
    %s177 = sphi 0, %s175
    %s178 = sphi 0, %s177
    %s192 = sphi 0, %s178
    %s196 = sphi 0, %s196
    %s198 = sphi 0, %s196
    %s199 = sphi 0, %s198
    %s213 = sphi 0, %s199
    %s219 = sphi 0, %s221
    %s222 = sphi 0, %s219
    %s223 = sphi 0, %s222
    %s239 = sphi 0, %s223
  $region4: #{tabular_model_forward.5} parent=0 // loop_header_branch
    %18 = sbr.rel (%p16) target = $region8
  $region5: #{tabular_model_forward.5} parent=0 // loop_body
    %s20 = ssub.s32 %s15, 1
    %s21 = ssub.s32 %s15, 2
    %s22 = sadd.s32 %s15, 1
    %s23 = ssub.s32 %s15, %s22
    %p24 = scmp.eq.s32.totalorder %s23, 0
    %s26 = sadd.s32 %s25, 1
    %s27 = scalar_select %p24, %s25, %s26
    %p30 = pneg %p24
    %p31 = scmp.eq.s32.totalorder %s15, 2
    %p32 = por %p30, %p31
    %p33 = scmp.ne.s32.totalorder %s25, %s28
    %p34 = scmp.eq.s32.totalorder %s15, 0
    %p35 = por %p33, %p34
    %p36 = scmp.ne.s32.totalorder %s25, %s28
    %p37 = scmp.eq.s32.totalorder %s20, 2
    %p38 = por %p36, %p37
    %p39 = scmp.ne.s32.totalorder %s28, %s29
    %p40 = scmp.eq.s32.totalorder %s20, 0
    %p41 = por %p39, %p40
    %p42 = scmp.ne.s32.totalorder %s28, %s29
    %p43 = scmp.eq.s32.totalorder %s21, 2
    %p44 = por %p42, %p43
    %p46 = scmp.ne.s32.totalorder %s29, %s45
    %p47 = scmp.eq.s32.totalorder %s21, 0
    %p48 = por %p46, %p47
    %s50 = sadd.s32 %s49, 1
    %p53 = scmp.eq.s32.totalorder %s15, 2
    %p54 = scmp.ne.s32.totalorder %s49, %s51
    %p55 = scmp.eq.s32.totalorder %s15, 0
    %p56 = por %p54, %p55
    %p57 = scmp.ne.s32.totalorder %s49, %s51
    %p58 = scmp.eq.s32.totalorder %s20, 2
    %p59 = por %p57, %p58
    %p60 = scmp.ne.s32.totalorder %s51, %s52
    %p61 = scmp.eq.s32.totalorder %s20, 0
    %p62 = por %p60, %p61
    %p63 = scmp.ne.s32.totalorder %s51, %s52
    %p64 = scmp.eq.s32.totalorder %s21, 2
    %p65 = por %p63, %p64
    %p67 = scmp.ne.s32.totalorder %s52, %s66
    %p68 = scmp.eq.s32.totalorder %s21, 0
    %p69 = por %p67, %p68
    %s71 = sadd.s32 %s70, 1
    %p74 = scmp.eq.s32.totalorder %s15, 2
    %p75 = scmp.ne.s32.totalorder %s70, %s72
    %p76 = scmp.eq.s32.totalorder %s15, 0
    %p77 = por %p75, %p76
    %p78 = scmp.ne.s32.totalorder %s70, %s72
    %p79 = scmp.eq.s32.totalorder %s20, 2
    %p80 = por %p78, %p79
    %p81 = scmp.ne.s32.totalorder %s72, %s73
    %p82 = scmp.eq.s32.totalorder %s20, 0
    %p83 = por %p81, %p82
    %p84 = scmp.ne.s32.totalorder %s72, %s73
    %p85 = scmp.eq.s32.totalorder %s21, 2
    %p86 = por %p84, %p85
    %p88 = scmp.ne.s32.totalorder %s73, %s87
    %p89 = scmp.eq.s32.totalorder %s21, 0
    %p90 = por %p88, %p89
    %s92 = sadd.s32 %s91, 1
    %p95 = scmp.eq.s32.totalorder %s15, 2
    %p96 = scmp.ne.s32.totalorder %s91, %s93
    %p97 = scmp.eq.s32.totalorder %s15, 0
    %p98 = por %p96, %p97
    %p99 = scmp.ne.s32.totalorder %s91, %s93
    %p100 = scmp.eq.s32.totalorder %s20, 2
    %p101 = por %p99, %p100
    %p102 = scmp.ne.s32.totalorder %s93, %s94
    %p103 = scmp.eq.s32.totalorder %s20, 0
    %p104 = por %p102, %p103
    %p105 = scmp.ne.s32.totalorder %s93, %s94
    %p106 = scmp.eq.s32.totalorder %s21, 2
    %p107 = por %p105, %p106
    %p109 = scmp.ne.s32.totalorder %s94, %s108
    %p110 = scmp.eq.s32.totalorder %s21, 0
    %p111 = por %p109, %p110
    %s113 = sadd.s32 %s112, 1
    %p116 = scmp.eq.s32.totalorder %s15, 2
    %p117 = scmp.ne.s32.totalorder %s112, %s114
    %p118 = scmp.eq.s32.totalorder %s15, 0
    %p119 = por %p117, %p118
    %p120 = scmp.ne.s32.totalorder %s112, %s114
    %p121 = scmp.eq.s32.totalorder %s20, 2
    %p122 = por %p120, %p121
    %p123 = scmp.ne.s32.totalorder %s114, %s115
    %p124 = scmp.eq.s32.totalorder %s20, 0
    %p125 = por %p123, %p124
    %p126 = scmp.ne.s32.totalorder %s114, %s115
    %p127 = scmp.eq.s32.totalorder %s21, 2
    %p128 = por %p126, %p127
    %p130 = scmp.ne.s32.totalorder %s115, %s129
    %p131 = scmp.eq.s32.totalorder %s21, 0
    %p132 = por %p130, %p131
    %s134 = sadd.s32 %s133, 1
    %p137 = scmp.eq.s32.totalorder %s15, 2
    %p138 = scmp.ne.s32.totalorder %s133, %s135
    %p139 = scmp.eq.s32.totalorder %s15, 0
    %p140 = por %p138, %p139
    %p141 = scmp.ne.s32.totalorder %s133, %s135
    %p142 = scmp.eq.s32.totalorder %s20, 2
    %p143 = por %p141, %p142
    %p144 = scmp.ne.s32.totalorder %s135, %s136
    %p145 = scmp.eq.s32.totalorder %s20, 0
    %p146 = por %p144, %p145
    %p147 = scmp.ne.s32.totalorder %s135, %s136
    %p148 = scmp.eq.s32.totalorder %s21, 2
    %p149 = por %p147, %p148
    %p151 = scmp.ne.s32.totalorder %s136, %s150
    %p152 = scmp.eq.s32.totalorder %s21, 0
    %p153 = por %p151, %p152
    %s155 = sadd.s32 %s154, 1
    %p158 = scmp.eq.s32.totalorder %s15, 2
    %p159 = scmp.ne.s32.totalorder %s154, %s156
    %p160 = scmp.eq.s32.totalorder %s15, 0
    %p161 = por %p159, %p160
    %p162 = scmp.ne.s32.totalorder %s154, %s156
    %p163 = scmp.eq.s32.totalorder %s20, 2
    %p164 = por %p162, %p163
    %p165 = scmp.ne.s32.totalorder %s156, %s157
    %p166 = scmp.eq.s32.totalorder %s20, 0
    %p167 = por %p165, %p166
    %p168 = scmp.ne.s32.totalorder %s156, %s157
    %p169 = scmp.eq.s32.totalorder %s21, 2
    %p170 = por %p168, %p169
    %p172 = scmp.ne.s32.totalorder %s157, %s171
    %p173 = scmp.eq.s32.totalorder %s21, 0
    %p174 = por %p172, %p173
    %s176 = sadd.s32 %s175, 1
    %p179 = scmp.eq.s32.totalorder %s15, 2
    %p180 = scmp.ne.s32.totalorder %s175, %s177
    %p181 = scmp.eq.s32.totalorder %s15, 0
    %p182 = por %p180, %p181
    %p183 = scmp.ne.s32.totalorder %s175, %s177
    %p184 = scmp.eq.s32.totalorder %s20, 2
    %p185 = por %p183, %p184
    %p186 = scmp.ne.s32.totalorder %s177, %s178
    %p187 = scmp.eq.s32.totalorder %s20, 0
    %p188 = por %p186, %p187
    %p189 = scmp.ne.s32.totalorder %s177, %s178
    %p190 = scmp.eq.s32.totalorder %s21, 2
    %p191 = por %p189, %p190
    %p193 = scmp.ne.s32.totalorder %s178, %s192
    %p194 = scmp.eq.s32.totalorder %s21, 0
    %p195 = por %p193, %p194
    %s197 = sadd.s32 %s196, 1
    %p200 = scmp.eq.s32.totalorder %s15, 2
    %p201 = scmp.ne.s32.totalorder %s196, %s198
    %p202 = scmp.eq.s32.totalorder %s15, 0
    %p203 = por %p201, %p202
    %p204 = scmp.ne.s32.totalorder %s196, %s198
    %p205 = scmp.eq.s32.totalorder %s20, 2
    %p206 = por %p204, %p205
    %p207 = scmp.ne.s32.totalorder %s198, %s199
    %p208 = scmp.eq.s32.totalorder %s20, 0
    %p209 = por %p207, %p208
    %p210 = scmp.ne.s32.totalorder %s198, %s199
    %p211 = scmp.eq.s32.totalorder %s21, 2
    %p212 = por %p210, %p211
    %p214 = scmp.ne.s32.totalorder %s199, %s213
    %p215 = scmp.eq.s32.totalorder %s21, 0
    %p216 = por %p214, %p215
    %s217 = ssub.s32 %s15, %s22
    %p218 = scmp.eq.s32.totalorder %s217, 0
    %s220 = sadd.s32 %s219, 1
    %s221 = scalar_select %p218, %s219, %s220
    %p224 = pneg %p218
    %p225 = scmp.eq.s32.totalorder %s15, 2
    %p226 = por %p224, %p225
    %p227 = scmp.ne.s32.totalorder %s219, %s222
    %p228 = scmp.eq.s32.totalorder %s15, 0
    %p229 = por %p227, %p228
    %p230 = scmp.ne.s32.totalorder %s219, %s222
    %p231 = scmp.eq.s32.totalorder %s20, 2
    %p232 = por %p230, %p231
    %p233 = scmp.ne.s32.totalorder %s222, %s223
    %p234 = scmp.eq.s32.totalorder %s20, 0
    %p235 = por %p233, %p234
    %p236 = scmp.ne.s32.totalorder %s222, %s223
    %p237 = scmp.eq.s32.totalorder %s21, 2
    %p238 = por %p236, %p237
    %p240 = scmp.ne.s32.totalorder %s223, %s239
    %p241 = scmp.eq.s32.totalorder %s21, 0
    %p242 = por %p240, %p241
    %p243 = scmp.le.s32.totalorder 1, %s15
    %p244 = scmp.lt.s32.totalorder %s15, 4
    %p245 = pnand %p243, %p244
    %p246 = pneg %p245
    // Predicated region
    $region9: #{tabular_model_forward.5} parent=5 // pred_check
      _
    $region10: #{tabular_model_forward.5} parent=5 // pred_check_branch
      %248 = sbr.rel (%p245) target = $region12
    $region11: #{tabular_model_forward.5} parent=5 // pred_region
      %s249 = ssub.s32 %s15, 1
      // Predicated region
      $region13: #{tabular_model_forward.5} parent=11 // pred_check
        %p250 = pneg %p62
      $region14: #{tabular_model_forward.5} parent=11 // pred_check_branch
        %252 = sbr.rel (%p250) target = $region16
      $region15: #{tabular_model_forward.5} parent=11 // pred_region
        _
      $region16: #{tabular_model_forward.5} parent=11 // pred_fallthru
        _
      // Predicated region
      $region17: #{tabular_model_forward.5} parent=11 // pred_check
        %p253 = pneg %p83
      $region18: #{tabular_model_forward.5} parent=11 // pred_check_branch
        %255 = sbr.rel (%p253) target = $region20
      $region19: #{tabular_model_forward.5} parent=11 // pred_region
        _
      $region20: #{tabular_model_forward.5} parent=11 // pred_fallthru
        _
      // Predicated region
      $region21: #{tabular_model_forward.5} parent=11 // pred_check
        %p256 = pneg %p104
      $region22: #{tabular_model_forward.5} parent=11 // pred_check_branch
        %258 = sbr.rel (%p256) target = $region24
      $region23: #{tabular_model_forward.5} parent=11 // pred_region
        _
      $region24: #{tabular_model_forward.5} parent=11 // pred_fallthru
        _
      // Predicated region
      $region25: #{tabular_model_forward.5} parent=11 // pred_check
        %p259 = pneg %p125
      $region26: #{tabular_model_forward.5} parent=11 // pred_check_branch
        %261 = sbr.rel (%p259) target = $region28
      $region27: #{tabular_model_forward.5} parent=11 // pred_region
        _
      $region28: #{tabular_model_forward.5} parent=11 // pred_fallthru
        _
      // Predicated region
      $region29: #{tabular_model_forward.5} parent=11 // pred_check
        %p262 = pneg %p146
      $region30: #{tabular_model_forward.5} parent=11 // pred_check_branch
        %264 = sbr.rel (%p262) target = $region32
      $region31: #{tabular_model_forward.5} parent=11 // pred_region
        _
      $region32: #{tabular_model_forward.5} parent=11 // pred_fallthru
        _
      // Predicated region
      $region33: #{tabular_model_forward.5} parent=11 // pred_check
        %p265 = pneg %p167
      $region34: #{tabular_model_forward.5} parent=11 // pred_check_branch
        %267 = sbr.rel (%p265) target = $region36
      $region35: #{tabular_model_forward.5} parent=11 // pred_region
        _
      $region36: #{tabular_model_forward.5} parent=11 // pred_fallthru
        _
      // Predicated region
      $region37: #{tabular_model_forward.5} parent=11 // pred_check
        %p268 = pneg %p188
      $region38: #{tabular_model_forward.5} parent=11 // pred_check_branch
        %270 = sbr.rel (%p268) target = $region40
      $region39: #{tabular_model_forward.5} parent=11 // pred_region
        _
      $region40: #{tabular_model_forward.5} parent=11 // pred_fallthru
        _
      // Predicated region
      $region41: #{tabular_model_forward.5} parent=11 // pred_check
        %p271 = pneg %p209
      $region42: #{tabular_model_forward.5} parent=11 // pred_check_branch
        %273 = sbr.rel (%p271) target = $region44
      $region43: #{tabular_model_forward.5} parent=11 // pred_region
        _
      $region44: #{tabular_model_forward.5} parent=11 // pred_fallthru
        _
    $region12: #{tabular_model_forward.5} parent=5 // pred_fallthru
      _
    %p274 = scmp.lt.s32.totalorder %s15, 3
    // Predicated region
    $region45: #{tabular_model_forward.5} parent=5 // pred_check
      %p275 = pneg %p274
    $region46: #{tabular_model_forward.5} parent=5 // pred_check_branch
      %277 = sbr.rel (%p275) target = $region48
    $region47: #{tabular_model_forward.5} parent=5 // pred_region
      // Predicated region
      $region49: #{tabular_model_forward.5} parent=47 // pred_check
        %p278 = pneg %p35
      $region50: #{tabular_model_forward.5} parent=47 // pred_check_branch
        %280 = sbr.rel (%p278) target = $region52
      $region51: #{tabular_model_forward.5} parent=47 // pred_region
        %p281 = scmp.lt.s32.totalorder %s15, 2
        %s282 = scalar_select %p281, %s15, 2
        %s283 = smul.addr %s282, 8
        %s284 = scalar_lea.vmem %s0, %s283
      $region52: #{tabular_model_forward.5} parent=47 // pred_fallthru
        _
    $region48: #{tabular_model_forward.5} parent=5 // pred_fallthru
      _
    %p285 = scmp.le.s32.totalorder 1, %s15
    %p286 = scmp.lt.s32.totalorder %s15, 4
    %p287 = pnand %p285, %p286
    %p288 = pneg %p287
    // Predicated region
    $region53: #{tabular_model_forward.5} parent=5 // pred_check
      _
    $region54: #{tabular_model_forward.5} parent=5 // pred_check_branch
      %290 = sbr.rel (%p287) target = $region56
    $region55: #{tabular_model_forward.5} parent=5 // pred_region
      %s291 = ssub.s32 %s15, 1
      %p292 = scmp.lt.s32.totalorder %s20, 2
      %s293 = scalar_select %p292, %s20, 2
      %s294 = smul.addr %s293, 8
      %s295 = scalar_lea.vmem %s0, %s294
      %p296 = pneg %p41
      %p297 = pneg %p38
      %p298 = pneg %p62
      %p299 = pneg %p59
      %p300 = pneg %p83
      %p301 = pneg %p80
      %p302 = pneg %p104
      %p303 = pneg %p101
      %p304 = pneg %p125
      %p305 = pneg %p122
      %p306 = pneg %p146
      %p307 = pneg %p143
      %p308 = pneg %p167
      %p309 = pneg %p164
      %p310 = pneg %p188
      %p311 = pneg %p185
      %p312 = pneg %p209
      %p313 = pneg %p206
      %p314 = pneg %p235
      %p315 = pneg %p232
      %p316 = scmp.lt.s32.totalorder %s20, 2
      %s317 = scalar_select %p316, %s20, 2
      %s318 = smul.addr %s317, 8
      %s319 = scalar_lea.vmem %s9, %s318
      %p320 = scmp.lt.s32.totalorder %s20, 2
      %s321 = scalar_select %p320, %s20, 2
      %s322 = smul.addr %s321, 8
      %s323 = scalar_lea.vmem %s0, %s322
      %p324 = scmp.lt.s32.totalorder %s20, 2
      %s325 = scalar_select %p324, %s20, 2
      %s326 = smul.addr %s325, 8
      %s327 = scalar_lea.vmem %s9, %s326
      %v329 = vld [vmem:[%s323] sm:$0xff]
      %v330 = vld [vmem:[%s1] sm:$0x1]
      %v332 = vlaneseq
      %v333 = vshrl.u32 %v332, 7
      %v334 = vsub.s32 0, %v333
      %v335 = vrot.slane %v330, %v334
      %v337 = vsub.f32 %v329, %v335
      %v338 = vld [vmem:[%s2] sm:$0x1]
      %v340 = vlaneseq
      %v341 = vshrl.u32 %v340, 7
      %v342 = vsub.s32 0, %v341
      %v343 = vrot.slane %v338, %v342
      %v345 = vmul.f32 %v337, %v343
      %v346 = vld [vmem:[%s3] sm:$0x1]
      %v348 = vlaneseq
      %v349 = vshrl.u32 %v348, 7
      %v350 = vsub.s32 0, %v349
      %v351 = vrot.slane %v346, %v350
      %v353 = vmul.f32 %v345, %v351
      %v354 = vld [vmem:[%s4] sm:$0x1]
      %v356 = vlaneseq
      %v357 = vshrl.u32 %v356, 7
      %v358 = vsub.s32 0, %v357
      %v359 = vrot.slane %v354, %v358
      %v361 = vadd.f32 %v353, %v359
      %v362 = vpack.c.bf16 %v361, %v361
      %v363 = vld [vmem:[%s5] sm:$0xff]
      %v364 = vld [vmem:[%s5 + $0x8] sm:$0xff]
      %v365 = vld [vmem:[%s5 + $0x10] sm:$0xff]
      %v366 = vld [vmem:[%s5 + $0x18] sm:$0xff]
      %v367 = vld [vmem:[%s5 + $0x20] sm:$0xff]
      %v368 = vld [vmem:[%s5 + $0x28] sm:$0xff]
      %v369 = vld [vmem:[%s5 + $0x30] sm:$0xff]
      %v370 = vld [vmem:[%s5 + $0x38] sm:$0xff]
      %v371 = vld [vmem:[%s5 + $0x40] sm:$0xff]
      %v372 = vld [vmem:[%s5 + $0x48] sm:$0xff]
      %v373 = vld [vmem:[%s5 + $0x50] sm:$0xff]
      %v374 = vld [vmem:[%s5 + $0x58] sm:$0xff]
      %v375 = vld [vmem:[%s5 + $0x60] sm:$0xff]
      %v376 = vld [vmem:[%s5 + $0x68] sm:$0xff]
      %v377 = vld [vmem:[%s5 + $0x70] sm:$0xff]
      %v378 = vld [vmem:[%s5 + $0x78] sm:$0xff]
      %v379 = vld [vmem:[%s6] sm:$0x3]
      %v381 = vlaneseq
      %v382 = vshrl.u32 %v381, 7
      %v383 = vsub.s32 0, %v382
      %v384 = vrot.slane %v379, %v383
      %v385 = vlaneseq
      %v386 = vshrl.u32 %v385, 7
      %v387 = vsub.s32 1, %v386
      %v388 = vrot.slane %v379, %v387
      %v407 = vunpack.c.l.b16 %v363
      %v408 = vunpack.c.h.b16 %v363
      %v409 = vunpack.c.l.b16 %v364
      %v410 = vunpack.c.h.b16 %v364
      %v411 = vunpack.c.l.b16 %v365
      %v412 = vunpack.c.h.b16 %v365
      %v413 = vunpack.c.l.b16 %v366
      %v414 = vunpack.c.h.b16 %v366
      %v415 = vunpack.c.l.b16 %v367
      %v416 = vunpack.c.h.b16 %v367
      %v417 = vunpack.c.l.b16 %v368
      %v418 = vunpack.c.h.b16 %v368
      %v419 = vunpack.c.l.b16 %v369
      %v420 = vunpack.c.h.b16 %v369
      %v421 = vunpack.c.l.b16 %v370
      %v422 = vunpack.c.h.b16 %v370
      %v423 = vunpack.c.l.b16 %v371
      %v424 = vunpack.c.h.b16 %v371
      %v425 = vunpack.c.l.b16 %v372
      %v426 = vunpack.c.h.b16 %v372
      %v427 = vunpack.c.l.b16 %v373
      %v428 = vunpack.c.h.b16 %v373
      %v429 = vunpack.c.l.b16 %v374
      %v430 = vunpack.c.h.b16 %v374
      %v431 = vunpack.c.l.b16 %v375
      %v432 = vunpack.c.h.b16 %v375
      %v433 = vunpack.c.l.b16 %v376
      %v434 = vunpack.c.h.b16 %v376
      %v435 = vunpack.c.l.b16 %v377
      %v436 = vunpack.c.h.b16 %v377
      %v437 = vunpack.c.l.b16 %v378
      %v438 = vunpack.c.h.b16 %v378
      %v439 = vpack.c.b16 %v409, %v407
      %v440 = vpack.c.b16 %v410, %v408
      %v441 = vpack.c.b16 %v413, %v411
      %v442 = vpack.c.b16 %v414, %v412
      %v443 = vpack.c.b16 %v417, %v415
      %v444 = vpack.c.b16 %v418, %v416
      %v445 = vpack.c.b16 %v421, %v419
      %v446 = vpack.c.b16 %v422, %v420
      %v447 = vpack.c.b16 %v425, %v423
      %v448 = vpack.c.b16 %v426, %v424
      %v449 = vpack.c.b16 %v429, %v427
      %v450 = vpack.c.b16 %v430, %v428
      %v451 = vpack.c.b16 %v433, %v431
      %v452 = vpack.c.b16 %v434, %v432
      %v453 = vpack.c.b16 %v437, %v435
      %v454 = vpack.c.b16 %v438, %v436
      %471 = vmatprep.subr.bf16.mxu0 %v454
      %472 = vmatpush1.bf16.msra.mxu0 %v453
      %473 = vmatprep.subr.bf16.mxu0 %v452
      %474 = vmatpush1.bf16.msra.mxu0 %v451
      %475 = vmatprep.subr.bf16.mxu0 %v450
      %476 = vmatpush1.bf16.msra.mxu0 %v449
      %477 = vmatprep.subr.bf16.mxu0 %v448
      %478 = vmatpush1.bf16.msra.mxu0 %v447
      %479 = vmatprep.subr.bf16.mxu0 %v446
      %480 = vmatpush1.bf16.msra.mxu0 %v445
      %481 = vmatprep.subr.bf16.mxu0 %v444
      %482 = vmatpush1.bf16.msra.mxu0 %v443
      %483 = vmatprep.subr.bf16.mxu0 %v442
      %484 = vmatpush1.bf16.msra.mxu0 %v441
      %485 = vmatprep.subr.bf16.mxu0 %v440
      %486 = vmatpush1.bf16.msra.mxu0 %v439
      %487 = vmatprep.subr.bf16.mxu0 0
      %488 = vmatpush2.bf16.msra.mxu0 0
      %489 = vmatprep.subr.bf16.mxu0 0
      %490 = vmatpush2.bf16.msra.mxu0 0
      %491 = vmatprep.subr.bf16.mxu0 0
      %492 = vmatpush2.bf16.msra.mxu0 0
      %493 = vmatprep.subr.bf16.mxu0 0
      %494 = vmatpush2.bf16.msra.mxu0 0
      %495 = vmatprep.subr.bf16.mxu0 0
      %496 = vmatpush2.bf16.msra.mxu0 0
      %497 = vmatprep.subr.bf16.mxu0 0
      %498 = vmatpush2.bf16.msra.mxu0 0
      %499 = vmatprep.subr.bf16.mxu0 0
      %500 = vmatpush2.bf16.msra.mxu0 0
      %501 = vmatprep.subr.bf16.mxu0 0
      %502 = vmatpush2.bf16.msra.mxu0 0
      %503 = vmatprep.mubr.bf16.mxu0 0
      %504 = vmatmul.mubr.bf16.gmra.mxu0 %v362
      %v505 = vpop.f32.mrf.mxu0
      %v506 = vadd.f32 %v384, %v505
      %v507 = vpop.f32.mrf.mxu0
      %v508 = vadd.f32 %v388, %v507
      %v509 = vpop.f32.mrf.mxu0
      %v510 = vpop.f32.mrf.mxu0
      %511 = vdwg.mxu0
      %v512 = vxor.u32 %v506, 2147483648
      %v513 = vmul.f32 %v512, 1.442695
      %v514 = vpow.pop %v513
      %v515 = vadd.f32 %v514, 1.0
      %v516 = vrcp.pop %v515
      %v517 = vmul.f32 1.0, %v516
      %v518 = vmul.f32 %v506, %v517
      %v519 = vmul.f32 %v518, %v508
      %v520 = vpack.c.bf16 %v519, %v519
      %v521 = vld [vmem:[%s7] sm:$0xf]
      %v522 = vld [vmem:[%s7 + $0x4] sm:$0xf]
      %v523 = vld [vmem:[%s7 + $0x8] sm:$0xf]
      %v524 = vld [vmem:[%s7 + $0xc] sm:$0xf]
      %v525 = vld [vmem:[%s7 + $0x10] sm:$0xf]
      %v526 = vld [vmem:[%s7 + $0x14] sm:$0xf]
      %v527 = vld [vmem:[%s7 + $0x18] sm:$0xf]
      %v528 = vld [vmem:[%s7 + $0x1c] sm:$0xf]
      %v529 = vld [vmem:[%s7 + $0x20] sm:$0xf]
      %v530 = vld [vmem:[%s7 + $0x24] sm:$0xf]
      %v531 = vld [vmem:[%s7 + $0x28] sm:$0xf]
      %v532 = vld [vmem:[%s7 + $0x2c] sm:$0xf]
      %v533 = vld [vmem:[%s7 + $0x30] sm:$0xf]
      %v534 = vld [vmem:[%s7 + $0x34] sm:$0xf]
      %v535 = vld [vmem:[%s7 + $0x38] sm:$0xf]
      %v536 = vld [vmem:[%s7 + $0x3c] sm:$0xf]
      %v537 = vld [vmem:[%s8] sm:$0x1]
      %v539 = vlaneseq
      %v540 = vshrl.u32 %v539, 7
      %v541 = vsub.s32 0, %v540
      %v542 = vrot.slane %v537, %v541
      %v560 = vunpack.c.l.b16 %v521
      %v561 = vunpack.c.l.b16 %v522
      %v562 = vunpack.c.l.b16 %v523
      %v563 = vunpack.c.l.b16 %v524
      %v564 = vunpack.c.l.b16 %v525
      %v565 = vunpack.c.l.b16 %v526
      %v566 = vunpack.c.l.b16 %v527
      %v567 = vunpack.c.l.b16 %v528
      %v568 = vunpack.c.l.b16 %v529
      %v569 = vunpack.c.l.b16 %v530
      %v570 = vunpack.c.l.b16 %v531
      %v571 = vunpack.c.l.b16 %v532
      %v572 = vunpack.c.l.b16 %v533
      %v573 = vunpack.c.l.b16 %v534
      %v574 = vunpack.c.l.b16 %v535
      %v575 = vunpack.c.l.b16 %v536
      %v576 = vpack.c.b16 %v561, %v560
      %v577 = vpack.c.b16 %v563, %v562
      %v578 = vpack.c.b16 %v565, %v564
      %v579 = vpack.c.b16 %v567, %v566
      %v580 = vpack.c.b16 %v569, %v568
      %v581 = vpack.c.b16 %v571, %v570
      %v582 = vpack.c.b16 %v573, %v572
      %v583 = vpack.c.b16 %v575, %v574
      %592 = vmatprep.subr.bf16.mxu0 0
      %593 = vmatpush1.bf16.msra.mxu0 %v583
      %594 = vmatprep.subr.bf16.mxu0 0
      %595 = vmatpush1.bf16.msra.mxu0 %v582
      %596 = vmatprep.subr.bf16.mxu0 0
      %597 = vmatpush1.bf16.msra.mxu0 %v581
      %598 = vmatprep.subr.bf16.mxu0 0
      %599 = vmatpush1.bf16.msra.mxu0 %v580
      %600 = vmatprep.subr.bf16.mxu0 0
      %601 = vmatpush1.bf16.msra.mxu0 %v579
      %602 = vmatprep.subr.bf16.mxu0 0
      %603 = vmatpush1.bf16.msra.mxu0 %v578
      %604 = vmatprep.subr.bf16.mxu0 0
      %605 = vmatpush1.bf16.msra.mxu0 %v577
      %606 = vmatprep.subr.bf16.mxu0 0
      %607 = vmatpush1.bf16.msra.mxu0 %v576
      %608 = vmatprep.subr.bf16.mxu0 0
      %609 = vmatpush2.bf16.msra.mxu0 0
      %610 = vmatprep.subr.bf16.mxu0 0
      %611 = vmatpush2.bf16.msra.mxu0 0
      %612 = vmatprep.subr.bf16.mxu0 0
      %613 = vmatpush2.bf16.msra.mxu0 0
      %614 = vmatprep.subr.bf16.mxu0 0
      %615 = vmatpush2.bf16.msra.mxu0 0
      %616 = vmatprep.subr.bf16.mxu0 0
      %617 = vmatpush2.bf16.msra.mxu0 0
      %618 = vmatprep.subr.bf16.mxu0 0
      %619 = vmatpush2.bf16.msra.mxu0 0
      %620 = vmatprep.subr.bf16.mxu0 0
      %621 = vmatpush2.bf16.msra.mxu0 0
      %622 = vmatprep.subr.bf16.mxu0 0
      %623 = vmatpush2.bf16.msra.mxu0 0
      %624 = vmatprep.mubr.bf16.mxu0 0
      %625 = vmatmul.mubr.bf16.gmra.mxu0 %v520
      %v626 = vpop.f32.mrf.mxu0
      %v627 = vadd.f32 %v542, %v626
      %v628 = vpop.f32.mrf.mxu0
      %v629 = vpop.f32.mrf.mxu0
      %v630 = vpop.f32.mrf.mxu0
      %631 = vdwg.mxu0
      %632 = vst [vmem:[%s327] sm:$0xff] %v627
      %p633 = scmp.lt.s32.totalorder %s20, 2
      %s634 = scalar_select %p633, %s20, 2
      %s635 = smul.addr %s634, 8
      %s636 = scalar_lea.vmem %s9, %s635
      // Predicated region
      $region57: #{tabular_model_forward.5} parent=55 // pred_check
        %p637 = pneg %p232
      $region58: #{tabular_model_forward.5} parent=55 // pred_check_branch
        %639 = sbr.rel (%p637) target = $region60
      $region59: #{tabular_model_forward.5} parent=55 // pred_region
        _
      $region60: #{tabular_model_forward.5} parent=55 // pred_fallthru
        _
    $region56: #{tabular_model_forward.5} parent=5 // pred_fallthru
      _
    %p640 = scmp.le.s32.totalorder 2, %s15
    // Predicated region
    $region61: #{tabular_model_forward.5} parent=5 // pred_check
      %p641 = pneg %p640
    $region62: #{tabular_model_forward.5} parent=5 // pred_check_branch
      %643 = sbr.rel (%p641) target = $region64
    $region63: #{tabular_model_forward.5} parent=5 // pred_region
      %s644 = ssub.s32 %s15, 2
      // Predicated region
      $region65: #{tabular_model_forward.5} parent=63 // pred_check
        %p645 = pneg %p238
      $region66: #{tabular_model_forward.5} parent=63 // pred_check_branch
        %647 = sbr.rel (%p645) target = $region68
      $region67: #{tabular_model_forward.5} parent=63 // pred_region
        %p648 = scmp.lt.s32.totalorder %s21, 2
        %s649 = scalar_select %p648, %s21, 2
        %s650 = smul.addr %s649, 8
        %s651 = scalar_lea.vmem %s9, %s650
      $region68: #{tabular_model_forward.5} parent=63 // pred_fallthru
        _
    $region64: #{tabular_model_forward.5} parent=5 // pred_fallthru
      _
  $region6: #{tabular_model_forward.5} parent=0 // loop_footer
    %s19 = sadd.s32 1, %s15
  $region7: #{tabular_model_forward.5} parent=0 // loop_footer_branch
    %14 = sbr.rel target = $region3
  $region8: #{tabular_model_forward.5} parent=0 // loop_exit
    _

</llo_original>
